<compile_context>
chip_gen: v5e
topology: v5e:2x2
jax: 0.10.0
libtpu: 0.0.40
codegen_flags: <defaults>
</compile_context>

<pallas_src>
import functools

import jax
import jax.numpy as jnp
from jax import lax
from jax.experimental import pallas as pl
from jax.experimental.pallas import tpu as pltpu

TANH_CONSTANT = 1.5      # cfg default
OUT_LANES = 128          # lane-dense output slab width
# temperature = -1 in cfg defaults -> no temperature division


def _controller_kernel(slab_ref, out_ref, *, L, H, B):
    """2-layer LSTM recurrence + batched softmax/sampling head.

    slab_ref : (5H+3+2L, 4H) f32, rows:
        [0:H)      W_ih0.T          [H:2H)    W_hh0.T
        [2H:3H)    W_ih1.T          [3H:4H)   W_hh1.T
        4H         b0 (= b_ih0+b_hh0)   4H+1  b1 (= b_ih1+b_hh1)
        [4H+2:5H+2)  W_soft.T padded to 4H lanes (real lanes [0:B))
        5H+2       b_soft padded        [5H+3:5H+3+L)  emb padded (real [0:H))
        [5H+3+L:5H+3+2L)  Gumbel noise padded (real lanes [0:B))
    out_ref : (L, OUT_LANES) f32; lane0 = branch (as f32), lane1 = log_prob,
              lane2 = entropy, remaining lanes zero.
    """
    wih0 = slab_ref[pl.ds(0, H), :]                  # (H, 4H)
    whh0 = slab_ref[pl.ds(H, H), :]                  # (H, 4H)
    wih1 = slab_ref[pl.ds(2 * H, H), :]              # (H, 4H)
    whh1 = slab_ref[pl.ds(3 * H, H), :]              # (H, 4H)
    b0 = slab_ref[pl.ds(4 * H, 1), :]                # (1, 4H)
    b1 = slab_ref[pl.ds(4 * H + 1, 1), :]            # (1, 4H)
    wsoft = slab_ref[pl.ds(4 * H + 2, H), :]         # (H, 4H), real lanes [0:B)
    bsoft = slab_ref[pl.ds(5 * H + 2, 1), :]         # (1, 4H)
    emb = slab_ref[pl.ds(5 * H + 3, L), :]           # (L, 4H), real lanes [0:H)
    gumbel = slab_ref[pl.ds(5 * H + 3 + L, L), :]    # (L, 4H), real lanes [0:B)

    # --- hoisted layer-0 input projection for ALL steps (one batched matmul) ---
    x0_gates = jnp.dot(emb[:, 0:H], wih0,
                       preferred_element_type=jnp.float32) + b0         # (L, 4H)

    def cell(gates, c):
        # lane-dense nonlinearities over the full 4H lanes, sliced after
        sig = jax.nn.sigmoid(gates)
        tnh = jnp.tanh(gates)
        i = sig[:, 0:H]
        f = sig[:, H:2 * H]
        g = tnh[:, 2 * H:3 * H]
        o = sig[:, 3 * H:4 * H]
        c_new = f * c + i * g
        return o * jnp.tanh(c_new), c_new

    zero = jnp.zeros((1, H), jnp.float32)
    h0, c0, h1, c1 = zero, zero, zero, zero
    row = lax.broadcasted_iota(jnp.int32, (L, H), 0)
    h_all = jnp.zeros((L, H), jnp.float32)           # h1 of every step, in vregs

    # Fully unrolled serial recurrence (L is a small static trace-time constant).
    for l in range(L):
        # Layer-1 recurrent+bias term depends only on the PREVIOUS h1, so it is
        # independent of this step's layer-0 matmul and can co-issue with it.
        g1_rec = jnp.dot(h1, whh1, preferred_element_type=jnp.float32) + b1
        gates0 = x0_gates[l:l + 1, :] + jnp.dot(
            h0, whh0, preferred_element_type=jnp.float32)
        h0, c0 = cell(gates0, c0)
        gates1 = jnp.dot(h0, wih1, preferred_element_type=jnp.float32) + g1_rec
        h1, c1 = cell(gates1, c1)
        # Collect h1 in registers (cheap masked select, off the serial chain).
        h_all = jnp.where(row == l, h1, h_all)

    # --- hoisted softmax / entropy / Gumbel-max head, batched over all L ---
    logit_full = jnp.dot(h_all, wsoft,
                         preferred_element_type=jnp.float32) + bsoft    # (L, 4H)
    logit = TANH_CONSTANT * jnp.tanh(logit_full[:, 0:B])                # (L, B)

    m = jnp.max(logit, axis=-1, keepdims=True)
    z = logit - m
    lse = jnp.log(jnp.sum(jnp.exp(z), axis=-1, keepdims=True))
    logp = z - lse                                                      # (L, B)
    probs = jnp.exp(logp)
    entropy = -jnp.sum(probs * logp, axis=-1, keepdims=True)            # (L, 1)

    # Gumbel-max sample, first-max tie-break (== argmax when noise is zero)
    pert = logit + gumbel[:, 0:B]
    pmax = jnp.max(pert, axis=-1, keepdims=True)
    iota = lax.broadcasted_iota(jnp.int32, (L, B), 1)
    branch = jnp.min(jnp.where(pert == pmax, iota, B),
                     axis=-1, keepdims=True).astype(jnp.int32)          # (L, 1)
    lp_sel = jnp.sum(jnp.where(iota == branch, logp, 0.0),
                     axis=-1, keepdims=True)                            # (L, 1)

    # Single lane-dense output slab: lane0=branch(f32), lane1=logp, lane2=entropy
    lane = lax.broadcasted_iota(jnp.int32, (L, OUT_LANES), 1)
    out_ref[...] = jnp.where(
        lane == 0, branch.astype(jnp.float32),
        jnp.where(lane == 1, lp_sel,
                  jnp.where(lane == 2, entropy, 0.0)))


def init_params(key, num_layers, num_branches, lstm_size):
    """Deterministic uniform(-0.1, 0.1) init (matches _reset_params intent)."""
    H = lstm_size
    keys = jax.random.split(key, 11)
    u = lambda k, shape: jax.random.uniform(k, shape, jnp.float32, -0.1, 0.1)
    return {
        "w_emb": u(keys[0], (num_layers, H)),          # nn.Embedding(num_layers, H)
        "weight_ih_l0": u(keys[1], (4 * H, H)),        # PyTorch LSTM shapes
        "weight_hh_l0": u(keys[2], (4 * H, H)),
        "bias_ih_l0": u(keys[3], (4 * H,)),
        "bias_hh_l0": u(keys[4], (4 * H,)),
        "weight_ih_l1": u(keys[5], (4 * H, H)),
        "weight_hh_l1": u(keys[6], (4 * H, H)),
        "bias_ih_l1": u(keys[7], (4 * H,)),
        "bias_hh_l1": u(keys[8], (4 * H,)),
        "w_soft_w": u(keys[9], (num_branches, H)),     # nn.Linear(H, num_branches)
        "w_soft_b": u(keys[10], (num_branches,)),
    }


def _make_gumbel(key, L, B):
    u = jax.random.uniform(key, (L, B), jnp.float32,
                           minval=1e-6, maxval=1.0 - 1e-6)
    return -jnp.log(-jnp.log(u))


def _pack_inputs(params, gumbel):
    """Pack ALL kernel inputs into one lane-dense (5H+3+2L, 4H) f32 slab."""
    L, H = params["w_emb"].shape
    B = params["w_soft_w"].shape[0]
    lanes = 4 * H

    def pad(x):
        return jnp.pad(x, ((0, 0), (0, lanes - x.shape[1])))

    b0 = (params["bias_ih_l0"] + params["bias_hh_l0"]).reshape(1, lanes)
    b1 = (params["bias_ih_l1"] + params["bias_hh_l1"]).reshape(1, lanes)
    slab = jnp.concatenate(
        [params["weight_ih_l0"].T, params["weight_hh_l0"].T,
         params["weight_ih_l1"].T, params["weight_hh_l1"].T,
         b0, b1,
         pad(params["w_soft_w"].T),                # (H, 4H)
         pad(params["w_soft_b"].reshape(1, B)),    # (1, 4H)
         pad(params["w_emb"]),                     # (L, 4H)
         pad(gumbel)],                             # (L, 4H)
        axis=0).astype(jnp.float32)
    return slab


def paganrl_controller_forward(params, bs, sample_key=None, determine_sample=False):
    L, H = params["w_emb"].shape
    B = params["w_soft_w"].shape[0]

    if determine_sample or sample_key is None:
        gumbel = jnp.zeros((L, B), jnp.float32)        # zero noise == argmax
    else:
        gumbel = _make_gumbel(sample_key, L, B)        # Categorical.sample RNG
        # TODO(synk): torch Categorical.sample uses torch's RNG stream; we
        # reproduce the distribution via Gumbel-max with host-side JAX noise.

    slab = _pack_inputs(params, gumbel)
    vmem = pl.BlockSpec(memory_space=pltpu.MemorySpace.VMEM)
    out = pl.pallas_call(
        functools.partial(_controller_kernel, L=L, H=H, B=B),
        out_shape=jax.ShapeDtypeStruct((L, OUT_LANES), jnp.float32),
        in_specs=[vmem],
        out_specs=vmem,
    )(slab)

    arc = out[:, 0].astype(jnp.int32)                  # exact: small ints in f32
    sample_arc = arc.reshape(1, L)                     # torch.stack(arc_seq, dim=1)
    sample_log_prob = out[:, 1].reshape(1, L)
    sample_entropy = out[:, 2].reshape(1, L)
    sample_prob = jnp.exp(sample_log_prob)
    batched_arcs = jnp.tile(sample_arc, (bs, 1))       # sample_arc.repeat((bs, 1))
    return batched_arcs, sample_arc, sample_log_prob, sample_entropy, sample_prob


def _reference_forward(params, gumbel):
    """Pure-JAX reference (step-by-step LSTM + softmax head)."""
    emb = params["w_emb"]
    L, H = emb.shape
    B = params["w_soft_w"].shape[0]
    wih = [params["weight_ih_l0"].T, params["weight_ih_l1"].T]
    whh = [params["weight_hh_l0"].T, params["weight_hh_l1"].T]
    bias = [(params["bias_ih_l0"] + params["bias_hh_l0"]).reshape(1, 4 * H),
            (params["bias_ih_l1"] + params["bias_hh_l1"]).reshape(1, 4 * H)]
    wsoft, bsoft = params["w_soft_w"].T, params["w_soft_b"].reshape(1, B)

    h = [jnp.zeros((1, H), jnp.float32), jnp.zeros((1, H), jnp.float32)]
    c = [jnp.zeros((1, H), jnp.float32), jnp.zeros((1, H), jnp.float32)]
    logits = []
    for l in range(L):
        x = emb[l:l + 1]
        for k in range(2):
            g = x @ wih[k] + h[k] @ whh[k] + bias[k]
            i, f = jax.nn.sigmoid(g[:, :H]), jax.nn.sigmoid(g[:, H:2 * H])
            gg, o = jnp.tanh(g[:, 2 * H:3 * H]), jax.nn.sigmoid(g[:, 3 * H:])
            c[k] = f * c[k] + i * gg
            h[k] = o * jnp.tanh(c[k])
            x = h[k]
        logits.append(TANH_CONSTANT * jnp.tanh(x @ wsoft + bsoft))
    logits = jnp.concatenate(logits, axis=0)            # (L, B)
    logp = jax.nn.log_softmax(logits, axis=-1)          # (L, B)
    ent = -jnp.sum(jnp.exp(logp) * logp, axis=-1)       # (L,)
    pert = logits + gumbel
    return logits, logp, ent, pert


if __name__ == "__main__":
    num_layers = 8        # controller decisions
    num_branches = 8      # candidate ops per layer
    lstm_size = 32
    bs = 2

    key = jax.random.PRNGKey(0)
    pkey, skey = jax.random.split(key)
    params = init_params(pkey, num_layers, num_branches, lstm_size)

    # stochastic sample (Gumbel-max) path
    batched_arcs, sample_arc, sample_log_prob, sample_entropy, sample_prob = \
        paganrl_controller_forward(params, bs, sample_key=skey,
                                   determine_sample=False)
    jax.block_until_ready(batched_arcs)

    # ---- correctness checks against the pure-JAX reference -----------------
    gumbel = _make_gumbel(skey, num_layers, num_branches)   # noise the kernel saw
    ref_logits, ref_logp, ref_ent, ref_pert = _reference_forward(params, gumbel)

    L = num_layers
    assert batched_arcs.shape == (bs, L) and sample_arc.shape == (1, L)
    assert batched_arcs.dtype == jnp.int32
    assert bool(jnp.all(batched_arcs == jnp.tile(sample_arc, (bs, 1)))), \
        "batched arc replication mismatch"

    arc = sample_arc[0]
    rows = jnp.arange(L)
    # Tolerance-aware argmax check: DEFAULT matmul precision lowers to bf16
    # MXU passes, so exact near-ties could flip; require the chosen branch to
    # be within 1e-2 of the reference perturbed maximum.
    assert bool(jnp.all(ref_pert[rows, arc] >=
                        jnp.max(ref_pert, axis=-1) - 1e-2)), \
        "sampled branch is not the argmax of the perturbed logits"
    assert bool(jnp.allclose(sample_log_prob[0], ref_logp[rows, arc],
                             atol=5e-3)), "log_prob mismatch"
    assert bool(jnp.allclose(sample_entropy[0], ref_ent, atol=5e-3)), \
        "entropy mismatch"

    # deterministic (argmax) path
    det = paganrl_controller_forward(params, bs, determine_sample=True)
    jax.block_until_ready(det[0])
    det_arc = det[1][0]
    assert bool(jnp.all(ref_logits[rows, det_arc] >=
                        jnp.max(ref_logits, axis=-1) - 1e-2)), \
        "determine_sample branch is not the argmax of the logits"

    print("KERNEL_OK")
</pallas_src>

<mosaic_0001>
module attributes {stable_mosaic.version = 11 : i64} {
  func.func @_controller_kernel(%arg0: memref<179x128xf32, #tpu.memory_space<vmem>>, %arg1: memref<8x128xf32, #tpu.memory_space<vmem>>) attributes {dimension_semantics = [], scalar_prefetch = 0 : i64, scratch_operands = 0 : i64, tpu.core_type = #tpu.core_type<tc>} {
    %c0 = arith.constant 0 : index
    %c0_0 = arith.constant 0 : index
    %0 = vector.load %arg0[%c0, %c0_0] : memref<179x128xf32, #tpu.memory_space<vmem>>, vector<32x128xf32>
    %c32 = arith.constant 32 : index
    %c0_1 = arith.constant 0 : index
    %1 = vector.load %arg0[%c32, %c0_1] : memref<179x128xf32, #tpu.memory_space<vmem>>, vector<32x128xf32>
    %c64 = arith.constant 64 : index
    %c0_2 = arith.constant 0 : index
    %2 = vector.load %arg0[%c64, %c0_2] : memref<179x128xf32, #tpu.memory_space<vmem>>, vector<32x128xf32>
    %c96 = arith.constant 96 : index
    %c0_3 = arith.constant 0 : index
    %3 = vector.load %arg0[%c96, %c0_3] : memref<179x128xf32, #tpu.memory_space<vmem>>, vector<32x128xf32>
    %c128 = arith.constant 128 : index
    %c0_4 = arith.constant 0 : index
    %4 = vector.load %arg0[%c128, %c0_4] : memref<179x128xf32, #tpu.memory_space<vmem>>, vector<1x128xf32>
    %c129 = arith.constant 129 : index
    %c0_5 = arith.constant 0 : index
    %5 = vector.load %arg0[%c129, %c0_5] : memref<179x128xf32, #tpu.memory_space<vmem>>, vector<1x128xf32>
    %c130 = arith.constant 130 : index
    %c0_6 = arith.constant 0 : index
    %6 = vector.load %arg0[%c130, %c0_6] : memref<179x128xf32, #tpu.memory_space<vmem>>, vector<32x128xf32>
    %c162 = arith.constant 162 : index
    %c0_7 = arith.constant 0 : index
    %7 = vector.load %arg0[%c162, %c0_7] : memref<179x128xf32, #tpu.memory_space<vmem>>, vector<1x128xf32>
    %c163 = arith.constant 163 : index
    %c0_8 = arith.constant 0 : index
    %8 = vector.load %arg0[%c163, %c0_8] : memref<179x128xf32, #tpu.memory_space<vmem>>, vector<8x128xf32>
    %c171 = arith.constant 171 : index
    %c0_9 = arith.constant 0 : index
    %9 = vector.load %arg0[%c171, %c0_9] : memref<179x128xf32, #tpu.memory_space<vmem>>, vector<8x128xf32>
    %10 = vector.extract_strided_slice %8 {offsets = [0, 0], sizes = [8, 32], strides = [1, 1]} : vector<8x128xf32> to vector<8x32xf32>
    %cst = arith.constant dense<0.000000e+00> : vector<8x128xf32>
    %11 = tpu.matmul %10, %0, %cst {dimension_numbers = #tpu.dot_dimension_numbers<[1], [0], [0], [1], [0, 0, 1, 1], [], []>} : vector<8x32xf32>, vector<32x128xf32>, vector<8x128xf32> -> vector<8x128xf32>
    %12 = vector.broadcast %4 : vector<1x128xf32> to vector<8x128xf32>
    %13 = arith.addf %11, %12 : vector<8x128xf32>
    %cst_10 = arith.constant 0.000000e+00 : f32
    %14 = vector.broadcast %cst_10 : f32 to vector<1x32xf32>
    %15 = tpu.iota {dimensions = array<i32: 0>} : vector<8x32xi32>
    %cst_11 = arith.constant 0.000000e+00 : f32
    %16 = vector.broadcast %cst_11 : f32 to vector<8x32xf32>
    %cst_12 = arith.constant dense<0.000000e+00> : vector<1x128xf32>
    %17 = tpu.matmul %14, %3, %cst_12 {dimension_numbers = #tpu.dot_dimension_numbers<[1], [0], [0], [1], [0, 0, 1, 1], [], []>} : vector<1x32xf32>, vector<32x128xf32>, vector<1x128xf32> -> vector<1x128xf32>
    %18 = arith.addf %17, %5 : vector<1x128xf32>
    %19 = vector.extract_strided_slice %13 {offsets = [0, 0], sizes = [1, 128], strides = [1, 1]} : vector<8x128xf32> to vector<1x128xf32>
    %cst_13 = arith.constant dense<0.000000e+00> : vector<1x128xf32>
    %20 = tpu.matmul %14, %1, %cst_13 {dimension_numbers = #tpu.dot_dimension_numbers<[1], [0], [0], [1], [0, 0, 1, 1], [], []>} : vector<1x32xf32>, vector<32x128xf32>, vector<1x128xf32> -> vector<1x128xf32>
    %21 = arith.addf %19, %20 : vector<1x128xf32>
    %22 = arith.negf %21 : vector<1x128xf32>
    %23 = math.exp %22 : vector<1x128xf32>
    %cst_14 = arith.constant 1.000000e+00 : f32
    %24 = vector.broadcast %cst_14 : f32 to vector<1x128xf32>
    %25 = arith.addf %24, %23 : vector<1x128xf32>
    %26 = arith.divf %24, %25 : vector<1x128xf32>
    %27 = math.tanh %21 : vector<1x128xf32>
    %28 = vector.extract_strided_slice %26 {offsets = [0, 0], sizes = [1, 32], strides = [1, 1]} : vector<1x128xf32> to vector<1x32xf32>
    %29 = vector.extract_strided_slice %26 {offsets = [0, 32], sizes = [1, 32], strides = [1, 1]} : vector<1x128xf32> to vector<1x32xf32>
    %30 = vector.extract_strided_slice %27 {offsets = [0, 64], sizes = [1, 32], strides = [1, 1]} : vector<1x128xf32> to vector<1x32xf32>
    %31 = vector.extract_strided_slice %26 {offsets = [0, 96], sizes = [1, 32], strides = [1, 1]} : vector<1x128xf32> to vector<1x32xf32>
    %32 = arith.mulf %29, %14 : vector<1x32xf32>
    %33 = arith.mulf %28, %30 : vector<1x32xf32>
    %34 = arith.addf %32, %33 : vector<1x32xf32>
    %35 = math.tanh %34 : vector<1x32xf32>
    %36 = arith.mulf %31, %35 : vector<1x32xf32>
    %cst_15 = arith.constant dense<0.000000e+00> : vector<1x128xf32>
    %37 = tpu.matmul %36, %2, %cst_15 {dimension_numbers = #tpu.dot_dimension_numbers<[1], [0], [0], [1], [0, 0, 1, 1], [], []>} : vector<1x32xf32>, vector<32x128xf32>, vector<1x128xf32> -> vector<1x128xf32>
    %38 = arith.addf %37, %18 : vector<1x128xf32>
    %39 = arith.negf %38 : vector<1x128xf32>
    %40 = math.exp %39 : vector<1x128xf32>
    %cst_16 = arith.constant 1.000000e+00 : f32
    %41 = vector.broadcast %cst_16 : f32 to vector<1x128xf32>
    %42 = arith.addf %41, %40 : vector<1x128xf32>
    %43 = arith.divf %41, %42 : vector<1x128xf32>
    %44 = math.tanh %38 : vector<1x128xf32>
    %45 = vector.extract_strided_slice %43 {offsets = [0, 0], sizes = [1, 32], strides = [1, 1]} : vector<1x128xf32> to vector<1x32xf32>
    %46 = vector.extract_strided_slice %43 {offsets = [0, 32], sizes = [1, 32], strides = [1, 1]} : vector<1x128xf32> to vector<1x32xf32>
    %47 = vector.extract_strided_slice %44 {offsets = [0, 64], sizes = [1, 32], strides = [1, 1]} : vector<1x128xf32> to vector<1x32xf32>
    %48 = vector.extract_strided_slice %43 {offsets = [0, 96], sizes = [1, 32], strides = [1, 1]} : vector<1x128xf32> to vector<1x32xf32>
    %49 = arith.mulf %46, %14 : vector<1x32xf32>
    %50 = arith.mulf %45, %47 : vector<1x32xf32>
    %51 = arith.addf %49, %50 : vector<1x32xf32>
    %52 = math.tanh %51 : vector<1x32xf32>
    %53 = arith.mulf %48, %52 : vector<1x32xf32>
    %c0_i32 = arith.constant 0 : i32
    %54 = vector.broadcast %c0_i32 : i32 to vector<8x32xi32>
    %55 = arith.cmpi eq, %15, %54 : vector<8x32xi32>
    %56 = vector.shape_cast %53 : vector<1x32xf32> to vector<1x32xf32>
    %57 = vector.broadcast %56 : vector<1x32xf32> to vector<8x32xf32>
    %58 = arith.select %55, %57, %16 : vector<8x32xi1>, vector<8x32xf32>
    %cst_17 = arith.constant dense<0.000000e+00> : vector<1x128xf32>
    %59 = tpu.matmul %53, %3, %cst_17 {dimension_numbers = #tpu.dot_dimension_numbers<[1], [0], [0], [1], [0, 0, 1, 1], [], []>} : vector<1x32xf32>, vector<32x128xf32>, vector<1x128xf32> -> vector<1x128xf32>
    %60 = arith.addf %59, %5 : vector<1x128xf32>
    %61 = vector.extract_strided_slice %13 {offsets = [1, 0], sizes = [1, 128], strides = [1, 1]} : vector<8x128xf32> to vector<1x128xf32>
    %cst_18 = arith.constant dense<0.000000e+00> : vector<1x128xf32>
    %62 = tpu.matmul %36, %1, %cst_18 {dimension_numbers = #tpu.dot_dimension_numbers<[1], [0], [0], [1], [0, 0, 1, 1], [], []>} : vector<1x32xf32>, vector<32x128xf32>, vector<1x128xf32> -> vector<1x128xf32>
    %63 = arith.addf %61, %62 : vector<1x128xf32>
    %64 = arith.negf %63 : vector<1x128xf32>
    %65 = math.exp %64 : vector<1x128xf32>
    %cst_19 = arith.constant 1.000000e+00 : f32
    %66 = vector.broadcast %cst_19 : f32 to vector<1x128xf32>
    %67 = arith.addf %66, %65 : vector<1x128xf32>
    %68 = arith.divf %66, %67 : vector<1x128xf32>
    %69 = math.tanh %63 : vector<1x128xf32>
    %70 = vector.extract_strided_slice %68 {offsets = [0, 0], sizes = [1, 32], strides = [1, 1]} : vector<1x128xf32> to vector<1x32xf32>
    %71 = vector.extract_strided_slice %68 {offsets = [0, 32], sizes = [1, 32], strides = [1, 1]} : vector<1x128xf32> to vector<1x32xf32>
    %72 = vector.extract_strided_slice %69 {offsets = [0, 64], sizes = [1, 32], strides = [1, 1]} : vector<1x128xf32> to vector<1x32xf32>
    %73 = vector.extract_strided_slice %68 {offsets = [0, 96], sizes = [1, 32], strides = [1, 1]} : vector<1x128xf32> to vector<1x32xf32>
    %74 = arith.mulf %71, %34 : vector<1x32xf32>
    %75 = arith.mulf %70, %72 : vector<1x32xf32>
    %76 = arith.addf %74, %75 : vector<1x32xf32>
    %77 = math.tanh %76 : vector<1x32xf32>
    %78 = arith.mulf %73, %77 : vector<1x32xf32>
    %cst_20 = arith.constant dense<0.000000e+00> : vector<1x128xf32>
    %79 = tpu.matmul %78, %2, %cst_20 {dimension_numbers = #tpu.dot_dimension_numbers<[1], [0], [0], [1], [0, 0, 1, 1], [], []>} : vector<1x32xf32>, vector<32x128xf32>, vector<1x128xf32> -> vector<1x128xf32>
    %80 = arith.addf %79, %60 : vector<1x128xf32>
    %81 = arith.negf %80 : vector<1x128xf32>
    %82 = math.exp %81 : vector<1x128xf32>
    %cst_21 = arith.constant 1.000000e+00 : f32
    %83 = vector.broadcast %cst_21 : f32 to vector<1x128xf32>
    %84 = arith.addf %83, %82 : vector<1x128xf32>
    %85 = arith.divf %83, %84 : vector<1x128xf32>
    %86 = math.tanh %80 : vector<1x128xf32>
    %87 = vector.extract_strided_slice %85 {offsets = [0, 0], sizes = [1, 32], strides = [1, 1]} : vector<1x128xf32> to vector<1x32xf32>
    %88 = vector.extract_strided_slice %85 {offsets = [0, 32], sizes = [1, 32], strides = [1, 1]} : vector<1x128xf32> to vector<1x32xf32>
    %89 = vector.extract_strided_slice %86 {offsets = [0, 64], sizes = [1, 32], strides = [1, 1]} : vector<1x128xf32> to vector<1x32xf32>
    %90 = vector.extract_strided_slice %85 {offsets = [0, 96], sizes = [1, 32], strides = [1, 1]} : vector<1x128xf32> to vector<1x32xf32>
    %91 = arith.mulf %88, %51 : vector<1x32xf32>
    %92 = arith.mulf %87, %89 : vector<1x32xf32>
    %93 = arith.addf %91, %92 : vector<1x32xf32>
    %94 = math.tanh %93 : vector<1x32xf32>
    %95 = arith.mulf %90, %94 : vector<1x32xf32>
    %c1_i32 = arith.constant 1 : i32
    %96 = vector.broadcast %c1_i32 : i32 to vector<8x32xi32>
    %97 = arith.cmpi eq, %15, %96 : vector<8x32xi32>
    %98 = vector.shape_cast %95 : vector<1x32xf32> to vector<1x32xf32>
    %99 = vector.broadcast %98 : vector<1x32xf32> to vector<8x32xf32>
    %100 = arith.select %97, %99, %58 : vector<8x32xi1>, vector<8x32xf32>
    %cst_22 = arith.constant dense<0.000000e+00> : vector<1x128xf32>
    %101 = tpu.matmul %95, %3, %cst_22 {dimension_numbers = #tpu.dot_dimension_numbers<[1], [0], [0], [1], [0, 0, 1, 1], [], []>} : vector<1x32xf32>, vector<32x128xf32>, vector<1x128xf32> -> vector<1x128xf32>
    %102 = arith.addf %101, %5 : vector<1x128xf32>
    %103 = vector.extract_strided_slice %13 {offsets = [2, 0], sizes = [1, 128], strides = [1, 1]} : vector<8x128xf32> to vector<1x128xf32>
    %cst_23 = arith.constant dense<0.000000e+00> : vector<1x128xf32>
    %104 = tpu.matmul %78, %1, %cst_23 {dimension_numbers = #tpu.dot_dimension_numbers<[1], [0], [0], [1], [0, 0, 1, 1], [], []>} : vector<1x32xf32>, vector<32x128xf32>, vector<1x128xf32> -> vector<1x128xf32>
    %105 = arith.addf %103, %104 : vector<1x128xf32>
    %106 = arith.negf %105 : vector<1x128xf32>
    %107 = math.exp %106 : vector<1x128xf32>
    %cst_24 = arith.constant 1.000000e+00 : f32
    %108 = vector.broadcast %cst_24 : f32 to vector<1x128xf32>
    %109 = arith.addf %108, %107 : vector<1x128xf32>
    %110 = arith.divf %108, %109 : vector<1x128xf32>
    %111 = math.tanh %105 : vector<1x128xf32>
    %112 = vector.extract_strided_slice %110 {offsets = [0, 0], sizes = [1, 32], strides = [1, 1]} : vector<1x128xf32> to vector<1x32xf32>
    %113 = vector.extract_strided_slice %110 {offsets = [0, 32], sizes = [1, 32], strides = [1, 1]} : vector<1x128xf32> to vector<1x32xf32>
    %114 = vector.extract_strided_slice %111 {offsets = [0, 64], sizes = [1, 32], strides = [1, 1]} : vector<1x128xf32> to vector<1x32xf32>
    %115 = vector.extract_strided_slice %110 {offsets = [0, 96], sizes = [1, 32], strides = [1, 1]} : vector<1x128xf32> to vector<1x32xf32>
    %116 = arith.mulf %113, %76 : vector<1x32xf32>
    %117 = arith.mulf %112, %114 : vector<1x32xf32>
    %118 = arith.addf %116, %117 : vector<1x32xf32>
    %119 = math.tanh %118 : vector<1x32xf32>
    %120 = arith.mulf %115, %119 : vector<1x32xf32>
    %cst_25 = arith.constant dense<0.000000e+00> : vector<1x128xf32>
    %121 = tpu.matmul %120, %2, %cst_25 {dimension_numbers = #tpu.dot_dimension_numbers<[1], [0], [0], [1], [0, 0, 1, 1], [], []>} : vector<1x32xf32>, vector<32x128xf32>, vector<1x128xf32> -> vector<1x128xf32>
    %122 = arith.addf %121, %102 : vector<1x128xf32>
    %123 = arith.negf %122 : vector<1x128xf32>
    %124 = math.exp %123 : vector<1x128xf32>
    %cst_26 = arith.constant 1.000000e+00 : f32
    %125 = vector.broadcast %cst_26 : f32 to vector<1x128xf32>
    %126 = arith.addf %125, %124 : vector<1x128xf32>
    %127 = arith.divf %125, %126 : vector<1x128xf32>
    %128 = math.tanh %122 : vector<1x128xf32>
    %129 = vector.extract_strided_slice %127 {offsets = [0, 0], sizes = [1, 32], strides = [1, 1]} : vector<1x128xf32> to vector<1x32xf32>
    %130 = vector.extract_strided_slice %127 {offsets = [0, 32], sizes = [1, 32], strides = [1, 1]} : vector<1x128xf32> to vector<1x32xf32>
    %131 = vector.extract_strided_slice %128 {offsets = [0, 64], sizes = [1, 32], strides = [1, 1]} : vector<1x128xf32> to vector<1x32xf32>
    %132 = vector.extract_strided_slice %127 {offsets = [0, 96], sizes = [1, 32], strides = [1, 1]} : vector<1x128xf32> to vector<1x32xf32>
    %133 = arith.mulf %130, %93 : vector<1x32xf32>
    %134 = arith.mulf %129, %131 : vector<1x32xf32>
    %135 = arith.addf %133, %134 : vector<1x32xf32>
    %136 = math.tanh %135 : vector<1x32xf32>
    %137 = arith.mulf %132, %136 : vector<1x32xf32>
    %c2_i32 = arith.constant 2 : i32
    %138 = vector.broadcast %c2_i32 : i32 to vector<8x32xi32>
    %139 = arith.cmpi eq, %15, %138 : vector<8x32xi32>
    %140 = vector.shape_cast %137 : vector<1x32xf32> to vector<1x32xf32>
    %141 = vector.broadcast %140 : vector<1x32xf32> to vector<8x32xf32>
    %142 = arith.select %139, %141, %100 : vector<8x32xi1>, vector<8x32xf32>
    %cst_27 = arith.constant dense<0.000000e+00> : vector<1x128xf32>
    %143 = tpu.matmul %137, %3, %cst_27 {dimension_numbers = #tpu.dot_dimension_numbers<[1], [0], [0], [1], [0, 0, 1, 1], [], []>} : vector<1x32xf32>, vector<32x128xf32>, vector<1x128xf32> -> vector<1x128xf32>
    %144 = arith.addf %143, %5 : vector<1x128xf32>
    %145 = vector.extract_strided_slice %13 {offsets = [3, 0], sizes = [1, 128], strides = [1, 1]} : vector<8x128xf32> to vector<1x128xf32>
    %cst_28 = arith.constant dense<0.000000e+00> : vector<1x128xf32>
    %146 = tpu.matmul %120, %1, %cst_28 {dimension_numbers = #tpu.dot_dimension_numbers<[1], [0], [0], [1], [0, 0, 1, 1], [], []>} : vector<1x32xf32>, vector<32x128xf32>, vector<1x128xf32> -> vector<1x128xf32>
    %147 = arith.addf %145, %146 : vector<1x128xf32>
    %148 = arith.negf %147 : vector<1x128xf32>
    %149 = math.exp %148 : vector<1x128xf32>
    %cst_29 = arith.constant 1.000000e+00 : f32
    %150 = vector.broadcast %cst_29 : f32 to vector<1x128xf32>
    %151 = arith.addf %150, %149 : vector<1x128xf32>
    %152 = arith.divf %150, %151 : vector<1x128xf32>
    %153 = math.tanh %147 : vector<1x128xf32>
    %154 = vector.extract_strided_slice %152 {offsets = [0, 0], sizes = [1, 32], strides = [1, 1]} : vector<1x128xf32> to vector<1x32xf32>
    %155 = vector.extract_strided_slice %152 {offsets = [0, 32], sizes = [1, 32], strides = [1, 1]} : vector<1x128xf32> to vector<1x32xf32>
    %156 = vector.extract_strided_slice %153 {offsets = [0, 64], sizes = [1, 32], strides = [1, 1]} : vector<1x128xf32> to vector<1x32xf32>
    %157 = vector.extract_strided_slice %152 {offsets = [0, 96], sizes = [1, 32], strides = [1, 1]} : vector<1x128xf32> to vector<1x32xf32>
    %158 = arith.mulf %155, %118 : vector<1x32xf32>
    %159 = arith.mulf %154, %156 : vector<1x32xf32>
    %160 = arith.addf %158, %159 : vector<1x32xf32>
    %161 = math.tanh %160 : vector<1x32xf32>
    %162 = arith.mulf %157, %161 : vector<1x32xf32>
    %cst_30 = arith.constant dense<0.000000e+00> : vector<1x128xf32>
    %163 = tpu.matmul %162, %2, %cst_30 {dimension_numbers = #tpu.dot_dimension_numbers<[1], [0], [0], [1], [0, 0, 1, 1], [], []>} : vector<1x32xf32>, vector<32x128xf32>, vector<1x128xf32> -> vector<1x128xf32>
    %164 = arith.addf %163, %144 : vector<1x128xf32>
    %165 = arith.negf %164 : vector<1x128xf32>
    %166 = math.exp %165 : vector<1x128xf32>
    %cst_31 = arith.constant 1.000000e+00 : f32
    %167 = vector.broadcast %cst_31 : f32 to vector<1x128xf32>
    %168 = arith.addf %167, %166 : vector<1x128xf32>
    %169 = arith.divf %167, %168 : vector<1x128xf32>
    %170 = math.tanh %164 : vector<1x128xf32>
    %171 = vector.extract_strided_slice %169 {offsets = [0, 0], sizes = [1, 32], strides = [1, 1]} : vector<1x128xf32> to vector<1x32xf32>
    %172 = vector.extract_strided_slice %169 {offsets = [0, 32], sizes = [1, 32], strides = [1, 1]} : vector<1x128xf32> to vector<1x32xf32>
    %173 = vector.extract_strided_slice %170 {offsets = [0, 64], sizes = [1, 32], strides = [1, 1]} : vector<1x128xf32> to vector<1x32xf32>
    %174 = vector.extract_strided_slice %169 {offsets = [0, 96], sizes = [1, 32], strides = [1, 1]} : vector<1x128xf32> to vector<1x32xf32>
    %175 = arith.mulf %172, %135 : vector<1x32xf32>
    %176 = arith.mulf %171, %173 : vector<1x32xf32>
    %177 = arith.addf %175, %176 : vector<1x32xf32>
    %178 = math.tanh %177 : vector<1x32xf32>
    %179 = arith.mulf %174, %178 : vector<1x32xf32>
    %c3_i32 = arith.constant 3 : i32
    %180 = vector.broadcast %c3_i32 : i32 to vector<8x32xi32>
    %181 = arith.cmpi eq, %15, %180 : vector<8x32xi32>
    %182 = vector.shape_cast %179 : vector<1x32xf32> to vector<1x32xf32>
    %183 = vector.broadcast %182 : vector<1x32xf32> to vector<8x32xf32>
    %184 = arith.select %181, %183, %142 : vector<8x32xi1>, vector<8x32xf32>
    %cst_32 = arith.constant dense<0.000000e+00> : vector<1x128xf32>
    %185 = tpu.matmul %179, %3, %cst_32 {dimension_numbers = #tpu.dot_dimension_numbers<[1], [0], [0], [1], [0, 0, 1, 1], [], []>} : vector<1x32xf32>, vector<32x128xf32>, vector<1x128xf32> -> vector<1x128xf32>
    %186 = arith.addf %185, %5 : vector<1x128xf32>
    %187 = vector.extract_strided_slice %13 {offsets = [4, 0], sizes = [1, 128], strides = [1, 1]} : vector<8x128xf32> to vector<1x128xf32>
    %cst_33 = arith.constant dense<0.000000e+00> : vector<1x128xf32>
    %188 = tpu.matmul %162, %1, %cst_33 {dimension_numbers = #tpu.dot_dimension_numbers<[1], [0], [0], [1], [0, 0, 1, 1], [], []>} : vector<1x32xf32>, vector<32x128xf32>, vector<1x128xf32> -> vector<1x128xf32>
    %189 = arith.addf %187, %188 : vector<1x128xf32>
    %190 = arith.negf %189 : vector<1x128xf32>
    %191 = math.exp %190 : vector<1x128xf32>
    %cst_34 = arith.constant 1.000000e+00 : f32
    %192 = vector.broadcast %cst_34 : f32 to vector<1x128xf32>
    %193 = arith.addf %192, %191 : vector<1x128xf32>
    %194 = arith.divf %192, %193 : vector<1x128xf32>
    %195 = math.tanh %189 : vector<1x128xf32>
    %196 = vector.extract_strided_slice %194 {offsets = [0, 0], sizes = [1, 32], strides = [1, 1]} : vector<1x128xf32> to vector<1x32xf32>
    %197 = vector.extract_strided_slice %194 {offsets = [0, 32], sizes = [1, 32], strides = [1, 1]} : vector<1x128xf32> to vector<1x32xf32>
    %198 = vector.extract_strided_slice %195 {offsets = [0, 64], sizes = [1, 32], strides = [1, 1]} : vector<1x128xf32> to vector<1x32xf32>
    %199 = vector.extract_strided_slice %194 {offsets = [0, 96], sizes = [1, 32], strides = [1, 1]} : vector<1x128xf32> to vector<1x32xf32>
    %200 = arith.mulf %197, %160 : vector<1x32xf32>
    %201 = arith.mulf %196, %198 : vector<1x32xf32>
    %202 = arith.addf %200, %201 : vector<1x32xf32>
    %203 = math.tanh %202 : vector<1x32xf32>
    %204 = arith.mulf %199, %203 : vector<1x32xf32>
    %cst_35 = arith.constant dense<0.000000e+00> : vector<1x128xf32>
    %205 = tpu.matmul %204, %2, %cst_35 {dimension_numbers = #tpu.dot_dimension_numbers<[1], [0], [0], [1], [0, 0, 1, 1], [], []>} : vector<1x32xf32>, vector<32x128xf32>, vector<1x128xf32> -> vector<1x128xf32>
    %206 = arith.addf %205, %186 : vector<1x128xf32>
    %207 = arith.negf %206 : vector<1x128xf32>
    %208 = math.exp %207 : vector<1x128xf32>
    %cst_36 = arith.constant 1.000000e+00 : f32
    %209 = vector.broadcast %cst_36 : f32 to vector<1x128xf32>
    %210 = arith.addf %209, %208 : vector<1x128xf32>
    %211 = arith.divf %209, %210 : vector<1x128xf32>
    %212 = math.tanh %206 : vector<1x128xf32>
    %213 = vector.extract_strided_slice %211 {offsets = [0, 0], sizes = [1, 32], strides = [1, 1]} : vector<1x128xf32> to vector<1x32xf32>
    %214 = vector.extract_strided_slice %211 {offsets = [0, 32], sizes = [1, 32], strides = [1, 1]} : vector<1x128xf32> to vector<1x32xf32>
    %215 = vector.extract_strided_slice %212 {offsets = [0, 64], sizes = [1, 32], strides = [1, 1]} : vector<1x128xf32> to vector<1x32xf32>
    %216 = vector.extract_strided_slice %211 {offsets = [0, 96], sizes = [1, 32], strides = [1, 1]} : vector<1x128xf32> to vector<1x32xf32>
    %217 = arith.mulf %214, %177 : vector<1x32xf32>
    %218 = arith.mulf %213, %215 : vector<1x32xf32>
    %219 = arith.addf %217, %218 : vector<1x32xf32>
    %220 = math.tanh %219 : vector<1x32xf32>
    %221 = arith.mulf %216, %220 : vector<1x32xf32>
    %c4_i32 = arith.constant 4 : i32
    %222 = vector.broadcast %c4_i32 : i32 to vector<8x32xi32>
    %223 = arith.cmpi eq, %15, %222 : vector<8x32xi32>
    %224 = vector.shape_cast %221 : vector<1x32xf32> to vector<1x32xf32>
    %225 = vector.broadcast %224 : vector<1x32xf32> to vector<8x32xf32>
    %226 = arith.select %223, %225, %184 : vector<8x32xi1>, vector<8x32xf32>
    %cst_37 = arith.constant dense<0.000000e+00> : vector<1x128xf32>
    %227 = tpu.matmul %221, %3, %cst_37 {dimension_numbers = #tpu.dot_dimension_numbers<[1], [0], [0], [1], [0, 0, 1, 1], [], []>} : vector<1x32xf32>, vector<32x128xf32>, vector<1x128xf32> -> vector<1x128xf32>
    %228 = arith.addf %227, %5 : vector<1x128xf32>
    %229 = vector.extract_strided_slice %13 {offsets = [5, 0], sizes = [1, 128], strides = [1, 1]} : vector<8x128xf32> to vector<1x128xf32>
    %cst_38 = arith.constant dense<0.000000e+00> : vector<1x128xf32>
    %230 = tpu.matmul %204, %1, %cst_38 {dimension_numbers = #tpu.dot_dimension_numbers<[1], [0], [0], [1], [0, 0, 1, 1], [], []>} : vector<1x32xf32>, vector<32x128xf32>, vector<1x128xf32> -> vector<1x128xf32>
    %231 = arith.addf %229, %230 : vector<1x128xf32>
    %232 = arith.negf %231 : vector<1x128xf32>
    %233 = math.exp %232 : vector<1x128xf32>
    %cst_39 = arith.constant 1.000000e+00 : f32
    %234 = vector.broadcast %cst_39 : f32 to vector<1x128xf32>
    %235 = arith.addf %234, %233 : vector<1x128xf32>
    %236 = arith.divf %234, %235 : vector<1x128xf32>
    %237 = math.tanh %231 : vector<1x128xf32>
    %238 = vector.extract_strided_slice %236 {offsets = [0, 0], sizes = [1, 32], strides = [1, 1]} : vector<1x128xf32> to vector<1x32xf32>
    %239 = vector.extract_strided_slice %236 {offsets = [0, 32], sizes = [1, 32], strides = [1, 1]} : vector<1x128xf32> to vector<1x32xf32>
    %240 = vector.extract_strided_slice %237 {offsets = [0, 64], sizes = [1, 32], strides = [1, 1]} : vector<1x128xf32> to vector<1x32xf32>
    %241 = vector.extract_strided_slice %236 {offsets = [0, 96], sizes = [1, 32], strides = [1, 1]} : vector<1x128xf32> to vector<1x32xf32>
    %242 = arith.mulf %239, %202 : vector<1x32xf32>
    %243 = arith.mulf %238, %240 : vector<1x32xf32>
    %244 = arith.addf %242, %243 : vector<1x32xf32>
    %245 = math.tanh %244 : vector<1x32xf32>
    %246 = arith.mulf %241, %245 : vector<1x32xf32>
    %cst_40 = arith.constant dense<0.000000e+00> : vector<1x128xf32>
    %247 = tpu.matmul %246, %2, %cst_40 {dimension_numbers = #tpu.dot_dimension_numbers<[1], [0], [0], [1], [0, 0, 1, 1], [], []>} : vector<1x32xf32>, vector<32x128xf32>, vector<1x128xf32> -> vector<1x128xf32>
    %248 = arith.addf %247, %228 : vector<1x128xf32>
    %249 = arith.negf %248 : vector<1x128xf32>
    %250 = math.exp %249 : vector<1x128xf32>
    %cst_41 = arith.constant 1.000000e+00 : f32
    %251 = vector.broadcast %cst_41 : f32 to vector<1x128xf32>
    %252 = arith.addf %251, %250 : vector<1x128xf32>
    %253 = arith.divf %251, %252 : vector<1x128xf32>
    %254 = math.tanh %248 : vector<1x128xf32>
    %255 = vector.extract_strided_slice %253 {offsets = [0, 0], sizes = [1, 32], strides = [1, 1]} : vector<1x128xf32> to vector<1x32xf32>
    %256 = vector.extract_strided_slice %253 {offsets = [0, 32], sizes = [1, 32], strides = [1, 1]} : vector<1x128xf32> to vector<1x32xf32>
    %257 = vector.extract_strided_slice %254 {offsets = [0, 64], sizes = [1, 32], strides = [1, 1]} : vector<1x128xf32> to vector<1x32xf32>
    %258 = vector.extract_strided_slice %253 {offsets = [0, 96], sizes = [1, 32], strides = [1, 1]} : vector<1x128xf32> to vector<1x32xf32>
    %259 = arith.mulf %256, %219 : vector<1x32xf32>
    %260 = arith.mulf %255, %257 : vector<1x32xf32>
    %261 = arith.addf %259, %260 : vector<1x32xf32>
    %262 = math.tanh %261 : vector<1x32xf32>
    %263 = arith.mulf %258, %262 : vector<1x32xf32>
    %c5_i32 = arith.constant 5 : i32
    %264 = vector.broadcast %c5_i32 : i32 to vector<8x32xi32>
    %265 = arith.cmpi eq, %15, %264 : vector<8x32xi32>
    %266 = vector.shape_cast %263 : vector<1x32xf32> to vector<1x32xf32>
    %267 = vector.broadcast %266 : vector<1x32xf32> to vector<8x32xf32>
    %268 = arith.select %265, %267, %226 : vector<8x32xi1>, vector<8x32xf32>
    %cst_42 = arith.constant dense<0.000000e+00> : vector<1x128xf32>
    %269 = tpu.matmul %263, %3, %cst_42 {dimension_numbers = #tpu.dot_dimension_numbers<[1], [0], [0], [1], [0, 0, 1, 1], [], []>} : vector<1x32xf32>, vector<32x128xf32>, vector<1x128xf32> -> vector<1x128xf32>
    %270 = arith.addf %269, %5 : vector<1x128xf32>
    %271 = vector.extract_strided_slice %13 {offsets = [6, 0], sizes = [1, 128], strides = [1, 1]} : vector<8x128xf32> to vector<1x128xf32>
    %cst_43 = arith.constant dense<0.000000e+00> : vector<1x128xf32>
    %272 = tpu.matmul %246, %1, %cst_43 {dimension_numbers = #tpu.dot_dimension_numbers<[1], [0], [0], [1], [0, 0, 1, 1], [], []>} : vector<1x32xf32>, vector<32x128xf32>, vector<1x128xf32> -> vector<1x128xf32>
    %273 = arith.addf %271, %272 : vector<1x128xf32>
    %274 = arith.negf %273 : vector<1x128xf32>
    %275 = math.exp %274 : vector<1x128xf32>
    %cst_44 = arith.constant 1.000000e+00 : f32
    %276 = vector.broadcast %cst_44 : f32 to vector<1x128xf32>
    %277 = arith.addf %276, %275 : vector<1x128xf32>
    %278 = arith.divf %276, %277 : vector<1x128xf32>
    %279 = math.tanh %273 : vector<1x128xf32>
    %280 = vector.extract_strided_slice %278 {offsets = [0, 0], sizes = [1, 32], strides = [1, 1]} : vector<1x128xf32> to vector<1x32xf32>
    %281 = vector.extract_strided_slice %278 {offsets = [0, 32], sizes = [1, 32], strides = [1, 1]} : vector<1x128xf32> to vector<1x32xf32>
    %282 = vector.extract_strided_slice %279 {offsets = [0, 64], sizes = [1, 32], strides = [1, 1]} : vector<1x128xf32> to vector<1x32xf32>
    %283 = vector.extract_strided_slice %278 {offsets = [0, 96], sizes = [1, 32], strides = [1, 1]} : vector<1x128xf32> to vector<1x32xf32>
    %284 = arith.mulf %281, %244 : vector<1x32xf32>
    %285 = arith.mulf %280, %282 : vector<1x32xf32>
    %286 = arith.addf %284, %285 : vector<1x32xf32>
    %287 = math.tanh %286 : vector<1x32xf32>
    %288 = arith.mulf %283, %287 : vector<1x32xf32>
    %cst_45 = arith.constant dense<0.000000e+00> : vector<1x128xf32>
    %289 = tpu.matmul %288, %2, %cst_45 {dimension_numbers = #tpu.dot_dimension_numbers<[1], [0], [0], [1], [0, 0, 1, 1], [], []>} : vector<1x32xf32>, vector<32x128xf32>, vector<1x128xf32> -> vector<1x128xf32>
    %290 = arith.addf %289, %270 : vector<1x128xf32>
    %291 = arith.negf %290 : vector<1x128xf32>
    %292 = math.exp %291 : vector<1x128xf32>
    %cst_46 = arith.constant 1.000000e+00 : f32
    %293 = vector.broadcast %cst_46 : f32 to vector<1x128xf32>
    %294 = arith.addf %293, %292 : vector<1x128xf32>
    %295 = arith.divf %293, %294 : vector<1x128xf32>
    %296 = math.tanh %290 : vector<1x128xf32>
    %297 = vector.extract_strided_slice %295 {offsets = [0, 0], sizes = [1, 32], strides = [1, 1]} : vector<1x128xf32> to vector<1x32xf32>
    %298 = vector.extract_strided_slice %295 {offsets = [0, 32], sizes = [1, 32], strides = [1, 1]} : vector<1x128xf32> to vector<1x32xf32>
    %299 = vector.extract_strided_slice %296 {offsets = [0, 64], sizes = [1, 32], strides = [1, 1]} : vector<1x128xf32> to vector<1x32xf32>
    %300 = vector.extract_strided_slice %295 {offsets = [0, 96], sizes = [1, 32], strides = [1, 1]} : vector<1x128xf32> to vector<1x32xf32>
    %301 = arith.mulf %298, %261 : vector<1x32xf32>
    %302 = arith.mulf %297, %299 : vector<1x32xf32>
    %303 = arith.addf %301, %302 : vector<1x32xf32>
    %304 = math.tanh %303 : vector<1x32xf32>
    %305 = arith.mulf %300, %304 : vector<1x32xf32>
    %c6_i32 = arith.constant 6 : i32
    %306 = vector.broadcast %c6_i32 : i32 to vector<8x32xi32>
    %307 = arith.cmpi eq, %15, %306 : vector<8x32xi32>
    %308 = vector.shape_cast %305 : vector<1x32xf32> to vector<1x32xf32>
    %309 = vector.broadcast %308 : vector<1x32xf32> to vector<8x32xf32>
    %310 = arith.select %307, %309, %268 : vector<8x32xi1>, vector<8x32xf32>
    %cst_47 = arith.constant dense<0.000000e+00> : vector<1x128xf32>
    %311 = tpu.matmul %305, %3, %cst_47 {dimension_numbers = #tpu.dot_dimension_numbers<[1], [0], [0], [1], [0, 0, 1, 1], [], []>} : vector<1x32xf32>, vector<32x128xf32>, vector<1x128xf32> -> vector<1x128xf32>
    %312 = arith.addf %311, %5 : vector<1x128xf32>
    %313 = vector.extract_strided_slice %13 {offsets = [7, 0], sizes = [1, 128], strides = [1, 1]} : vector<8x128xf32> to vector<1x128xf32>
    %cst_48 = arith.constant dense<0.000000e+00> : vector<1x128xf32>
    %314 = tpu.matmul %288, %1, %cst_48 {dimension_numbers = #tpu.dot_dimension_numbers<[1], [0], [0], [1], [0, 0, 1, 1], [], []>} : vector<1x32xf32>, vector<32x128xf32>, vector<1x128xf32> -> vector<1x128xf32>
    %315 = arith.addf %313, %314 : vector<1x128xf32>
    %316 = arith.negf %315 : vector<1x128xf32>
    %317 = math.exp %316 : vector<1x128xf32>
    %cst_49 = arith.constant 1.000000e+00 : f32
    %318 = vector.broadcast %cst_49 : f32 to vector<1x128xf32>
    %319 = arith.addf %318, %317 : vector<1x128xf32>
    %320 = arith.divf %318, %319 : vector<1x128xf32>
    %321 = math.tanh %315 : vector<1x128xf32>
    %322 = vector.extract_strided_slice %320 {offsets = [0, 0], sizes = [1, 32], strides = [1, 1]} : vector<1x128xf32> to vector<1x32xf32>
    %323 = vector.extract_strided_slice %320 {offsets = [0, 32], sizes = [1, 32], strides = [1, 1]} : vector<1x128xf32> to vector<1x32xf32>
    %324 = vector.extract_strided_slice %321 {offsets = [0, 64], sizes = [1, 32], strides = [1, 1]} : vector<1x128xf32> to vector<1x32xf32>
    %325 = vector.extract_strided_slice %320 {offsets = [0, 96], sizes = [1, 32], strides = [1, 1]} : vector<1x128xf32> to vector<1x32xf32>
    %326 = arith.mulf %323, %286 : vector<1x32xf32>
    %327 = arith.mulf %322, %324 : vector<1x32xf32>
    %328 = arith.addf %326, %327 : vector<1x32xf32>
    %329 = math.tanh %328 : vector<1x32xf32>
    %330 = arith.mulf %325, %329 : vector<1x32xf32>
    %cst_50 = arith.constant dense<0.000000e+00> : vector<1x128xf32>
    %331 = tpu.matmul %330, %2, %cst_50 {dimension_numbers = #tpu.dot_dimension_numbers<[1], [0], [0], [1], [0, 0, 1, 1], [], []>} : vector<1x32xf32>, vector<32x128xf32>, vector<1x128xf32> -> vector<1x128xf32>
    %332 = arith.addf %331, %312 : vector<1x128xf32>
    %333 = arith.negf %332 : vector<1x128xf32>
    %334 = math.exp %333 : vector<1x128xf32>
    %cst_51 = arith.constant 1.000000e+00 : f32
    %335 = vector.broadcast %cst_51 : f32 to vector<1x128xf32>
    %336 = arith.addf %335, %334 : vector<1x128xf32>
    %337 = arith.divf %335, %336 : vector<1x128xf32>
    %338 = math.tanh %332 : vector<1x128xf32>
    %339 = vector.extract_strided_slice %337 {offsets = [0, 0], sizes = [1, 32], strides = [1, 1]} : vector<1x128xf32> to vector<1x32xf32>
    %340 = vector.extract_strided_slice %337 {offsets = [0, 32], sizes = [1, 32], strides = [1, 1]} : vector<1x128xf32> to vector<1x32xf32>
    %341 = vector.extract_strided_slice %338 {offsets = [0, 64], sizes = [1, 32], strides = [1, 1]} : vector<1x128xf32> to vector<1x32xf32>
    %342 = vector.extract_strided_slice %337 {offsets = [0, 96], sizes = [1, 32], strides = [1, 1]} : vector<1x128xf32> to vector<1x32xf32>
    %343 = arith.mulf %340, %303 : vector<1x32xf32>
    %344 = arith.mulf %339, %341 : vector<1x32xf32>
    %345 = arith.addf %343, %344 : vector<1x32xf32>
    %346 = math.tanh %345 : vector<1x32xf32>
    %347 = arith.mulf %342, %346 : vector<1x32xf32>
    %c7_i32 = arith.constant 7 : i32
    %348 = vector.broadcast %c7_i32 : i32 to vector<8x32xi32>
    %349 = arith.cmpi eq, %15, %348 : vector<8x32xi32>
    %350 = vector.shape_cast %347 : vector<1x32xf32> to vector<1x32xf32>
    %351 = vector.broadcast %350 : vector<1x32xf32> to vector<8x32xf32>
    %352 = arith.select %349, %351, %310 : vector<8x32xi1>, vector<8x32xf32>
    %cst_52 = arith.constant dense<0.000000e+00> : vector<8x128xf32>
    %353 = tpu.matmul %352, %6, %cst_52 {dimension_numbers = #tpu.dot_dimension_numbers<[1], [0], [0], [1], [0, 0, 1, 1], [], []>} : vector<8x32xf32>, vector<32x128xf32>, vector<8x128xf32> -> vector<8x128xf32>
    %354 = vector.broadcast %7 : vector<1x128xf32> to vector<8x128xf32>
    %355 = arith.addf %353, %354 : vector<8x128xf32>
    %356 = vector.extract_strided_slice %355 {offsets = [0, 0], sizes = [8, 8], strides = [1, 1]} : vector<8x128xf32> to vector<8x8xf32>
    %357 = math.tanh %356 : vector<8x8xf32>
    %cst_53 = arith.constant 1.500000e+00 : f32
    %358 = vector.broadcast %cst_53 : f32 to vector<8x8xf32>
    %359 = arith.mulf %358, %357 : vector<8x8xf32>
    %cst_54 = arith.constant dense<0xFF800000> : vector<8xf32>
    %360 = vector.multi_reduction <maximumf>, %359, %cst_54 [1] : vector<8x8xf32> to vector<8xf32>
    %361 = vector.shape_cast %360 : vector<8xf32> to vector<8x1xf32>
    %362 = vector.broadcast %361 : vector<8x1xf32> to vector<8x8xf32>
    %363 = arith.subf %359, %362 : vector<8x8xf32>
    %364 = math.exp %363 : vector<8x8xf32>
    %cst_55 = arith.constant dense<0.000000e+00> : vector<8xf32>
    %365 = vector.multi_reduction <add>, %364, %cst_55 [1] : vector<8x8xf32> to vector<8xf32>
    %366 = vector.shape_cast %365 : vector<8xf32> to vector<8x1xf32>
    %367 = math.log %366 : vector<8x1xf32>
    %368 = vector.broadcast %367 : vector<8x1xf32> to vector<8x8xf32>
    %369 = arith.subf %363, %368 : vector<8x8xf32>
    %370 = math.exp %369 : vector<8x8xf32>
    %371 = arith.mulf %370, %369 : vector<8x8xf32>
    %cst_56 = arith.constant dense<0.000000e+00> : vector<8xf32>
    %372 = vector.multi_reduction <add>, %371, %cst_56 [1] : vector<8x8xf32> to vector<8xf32>
    %373 = vector.shape_cast %372 : vector<8xf32> to vector<8x1xf32>
    %cst_57 = arith.constant 0.000000e+00 : f32
    %374 = vector.broadcast %cst_57 : f32 to vector<8x1xf32>
    %375 = arith.subf %374, %373 : vector<8x1xf32>
    %376 = vector.extract_strided_slice %9 {offsets = [0, 0], sizes = [8, 8], strides = [1, 1]} : vector<8x128xf32> to vector<8x8xf32>
    %377 = arith.addf %359, %376 : vector<8x8xf32>
    %cst_58 = arith.constant dense<0xFF800000> : vector<8xf32>
    %378 = vector.multi_reduction <maximumf>, %377, %cst_58 [1] : vector<8x8xf32> to vector<8xf32>
    %379 = vector.shape_cast %378 : vector<8xf32> to vector<8x1xf32>
    %380 = tpu.iota {dimensions = array<i32: 1>} : vector<8x8xi32>
    %381 = vector.broadcast %379 : vector<8x1xf32> to vector<8x8xf32>
    %382 = arith.cmpf oeq, %377, %381 : vector<8x8xf32>
    %c8_i32 = arith.constant 8 : i32
    %383 = vector.broadcast %c8_i32 : i32 to vector<8x8xi32>
    %384 = arith.select %382, %380, %383 : vector<8x8xi1>, vector<8x8xi32>
    %cst_59 = arith.constant dense<2147483647> : vector<8xi32>
    %385 = vector.multi_reduction <minsi>, %384, %cst_59 [1] : vector<8x8xi32> to vector<8xi32>
    %386 = vector.shape_cast %385 : vector<8xi32> to vector<8x1xi32>
    %387 = vector.broadcast %386 : vector<8x1xi32> to vector<8x8xi32>
    %388 = arith.cmpi eq, %380, %387 : vector<8x8xi32>
    %cst_60 = arith.constant 0.000000e+00 : f32
    %389 = vector.broadcast %cst_60 : f32 to vector<8x8xf32>
    %390 = arith.select %388, %369, %389 : vector<8x8xi1>, vector<8x8xf32>
    %cst_61 = arith.constant dense<0.000000e+00> : vector<8xf32>
    %391 = vector.multi_reduction <add>, %390, %cst_61 [1] : vector<8x8xf32> to vector<8xf32>
    %392 = vector.shape_cast %391 : vector<8xf32> to vector<8x1xf32>
    %393 = tpu.iota {dimensions = array<i32: 1>} : vector<8x128xi32>
    %c0_i32_62 = arith.constant 0 : i32
    %394 = vector.broadcast %c0_i32_62 : i32 to vector<8x128xi32>
    %395 = arith.cmpi eq, %393, %394 : vector<8x128xi32>
    %396 = arith.sitofp %386 : vector<8x1xi32> to vector<8x1xf32>
    %c1_i32_63 = arith.constant 1 : i32
    %397 = vector.broadcast %c1_i32_63 : i32 to vector<8x128xi32>
    %398 = arith.cmpi eq, %393, %397 : vector<8x128xi32>
    %c2_i32_64 = arith.constant 2 : i32
    %399 = vector.broadcast %c2_i32_64 : i32 to vector<8x128xi32>
    %400 = arith.cmpi eq, %393, %399 : vector<8x128xi32>
    %cst_65 = arith.constant 0.000000e+00 : f32
    %401 = vector.shape_cast %375 : vector<8x1xf32> to vector<8x1xf32>
    %402 = vector.broadcast %401 : vector<8x1xf32> to vector<8x128xf32>
    %403 = vector.broadcast %cst_65 : f32 to vector<8x128xf32>
    %404 = arith.select %400, %402, %403 : vector<8x128xi1>, vector<8x128xf32>
    %405 = vector.shape_cast %392 : vector<8x1xf32> to vector<8x1xf32>
    %406 = vector.broadcast %405 : vector<8x1xf32> to vector<8x128xf32>
    %407 = arith.select %398, %406, %404 : vector<8x128xi1>, vector<8x128xf32>
    %408 = vector.shape_cast %396 : vector<8x1xf32> to vector<8x1xf32>
    %409 = vector.broadcast %408 : vector<8x1xf32> to vector<8x128xf32>
    %410 = arith.select %395, %409, %407 : vector<8x128xi1>, vector<8x128xf32>
    %c0_66 = arith.constant 0 : index
    %c0_67 = arith.constant 0 : index
    %411 = vector.load %arg1[%c0_66, %c0_67] : memref<8x128xf32, #tpu.memory_space<vmem>>, vector<8x128xf32>
    tpu.vector_store %arg1[%c0_66, %c0_67], %410 {strides = array<i32>} : memref<8x128xf32, #tpu.memory_space<vmem>>, vector<8x128xf32>,
    return
  }
}

</mosaic_0001>

<llo_original>
// kernel: tpu_custom_call.1
$region0: #{tpu_custom_call.1}
  #allocation0 [shape = 'u32[]', space=smem, size = 0x4, offset = 0x4, fixed_abs, tag = 'smem constant byte address 0x4 - core index']
  #allocation1 [shape = 'u32[72,128]{1,0:T(1,128)}', space=vmem, size = 0x9000, scoped, tag = 'internal scratch']
  %s0 = inlined_call_operand.hbm [shape: f32[179,128], index: 0, kind: input, shape index: {}]
  %s1 = inlined_call_operand.hbm [shape: f32[8,128], index: 1, kind: output, shape index: {}]
  %s2 = sld [smem:[#allocation0]]
  $region18: #{tpu_custom_call.1} parent=0
    _
  %s4 = ssub.s32 1, %s2
  %s5 = scalar_select 0, %s4, %s2
  $region1: #{tpu_custom_call.1} parent=0
    #allocation2 [shape = 'u8[94208]{0}', space=vmem, size = 0x17000, scoped, tag = 'input window, operand 0, single buffered']
    #allocation3 [shape = 's32[1]{0}', space=sflag, size = 0x4, scoped, tag = 'scoped memory for tpu_custom_call.1']
    #allocation4 [shape = 's32[1]{0}', space=sflag, size = 0x4, scoped, tag = 'scoped memory for tpu_custom_call.1']
    #allocation5 [shape = 'u8[4096]{0}', space=vmem, size = 0x1000, scoped, tag = 'output window, operand 0, single buffered']
    %6 = vsyncpa [#allocation3], 0
    %7 = vsyncpa [#allocation4], 0
    // Predicated region
    $region2: #{tpu_custom_call.1} parent=1 // pred_check
      _
    $region3: #{tpu_custom_call.1} parent=1 // pred_check_branch
      %9 = sbr.rel (0) target = $region5
    $region4: #{tpu_custom_call.1} parent=1 // pred_region
      %11 = vsyncadd [#allocation3], 0
      %s12 = sshll.u32 %s0, 4
      %s13 = int_to_ptr.hbm [resolvable:$true] %s12
      %s14 = sshll.u32 [#allocation2], 4
      %s15 = int_to_ptr.vmem [resolvable:$true] %s14
      %20 = dma.hbm_to_vmem [thread:$0]  %s13, 2944, %s15, [#allocation3], 128, 128, 8
    $region5: #{tpu_custom_call.1} parent=1 // pred_fallthru
      _
    // Predicated region
    $region6: #{tpu_custom_call.1} parent=1 // pred_check
      _
    $region7: #{tpu_custom_call.1} parent=1 // pred_check_branch
      %22 = sbr.rel (0) target = $region9
    $region8: #{tpu_custom_call.1} parent=1 // pred_region
      %24 = dma.done [#allocation3], 2944
    $region9: #{tpu_custom_call.1} parent=1 // pred_fallthru
      _
    %v25 = vld [vmem:[#allocation2] sm:$0xff]
    %v26 = vld [vmem:[#allocation2 + $0x8] sm:$0xff]
    %v27 = vld [vmem:[#allocation2 + $0x10] sm:$0xff]
    %v28 = vld [vmem:[#allocation2 + $0x18] sm:$0xff]
    %v29 = vld [vmem:[#allocation2 + $0x20] sm:$0xff]
    %v30 = vld [vmem:[#allocation2 + $0x28] sm:$0xff]
    %v31 = vld [vmem:[#allocation2 + $0x30] sm:$0xff]
    %v32 = vld [vmem:[#allocation2 + $0x38] sm:$0xff]
    %v33 = vld [vmem:[#allocation2 + $0x40] sm:$0xff]
    %v34 = vld [vmem:[#allocation2 + $0x48] sm:$0xff]
    %v35 = vld [vmem:[#allocation2 + $0x50] sm:$0xff]
    %v36 = vld [vmem:[#allocation2 + $0x58] sm:$0xff]
    %v37 = vld [vmem:[#allocation2 + $0x60] sm:$0xff]
    %v38 = vld [vmem:[#allocation2 + $0x68] sm:$0xff]
    %v39 = vld [vmem:[#allocation2 + $0x70] sm:$0xff]
    %v40 = vld [vmem:[#allocation2 + $0x78] sm:$0xff]
    %v41 = vld [vmem:[#allocation2 + $0x80] sm:$0x1]
    %v42 = vld [vmem:[#allocation2 + $0x81] sm:$0x1]
    %v43 = vld [vmem:[#allocation2 + $0x82] sm:$0xff]
    %v44 = vld [vmem:[#allocation2 + $0x8a] sm:$0xff]
    %v45 = vld [vmem:[#allocation2 + $0x92] sm:$0xff]
    %v46 = vld [vmem:[#allocation2 + $0x9a] sm:$0xff]
    %v47 = vld [vmem:[#allocation2 + $0xa2] sm:$0x1]
    %v48 = vld [vmem:[#allocation2 + $0xa3] sm:$0xff]
    %v49 = vld [vmem:[#allocation2 + $0xab] sm:$0xff]
    %v50 = vperm.slane %v41, 0
    %vm51 = vcmask 261120
    %v53 = vsel %vm51, %v48, 0
    %55 = vmatpush.msra.mxu0 0.0
    %56 = vmatpush.msra.mxu0 0.0
    %57 = vmatpush.msra.mxu0 0.0
    %58 = vmatpush.msra.mxu0 0.0
    %59 = vmatpush.msra.mxu0 0.0
    %60 = vmatpush.msra.mxu0 0.0
    %61 = vmatpush.msra.mxu0 0.0
    %62 = vmatpush.msra.mxu0 0.0
    %63 = vmatpush.msra.mxu0 0.0
    %64 = vmatpush.msra.mxu0 0.0
    %65 = vmatpush.msra.mxu0 0.0
    %66 = vmatpush.msra.mxu0 0.0
    %67 = vmatpush.msra.mxu0 %v28
    %68 = vmatpush.msra.mxu0 %v27
    %69 = vmatpush.msra.mxu0 %v26
    %70 = vmatpush.msra.mxu0 %v25
    %71 = vmatmul.f32.gmra.mxu0 %v53
    %v72 = vpop.f32.mrf.mxu0
    %v73 = vadd.f32 %v50, %v72
    %74 = vdwg.mxu0
    %v75 = vlaneseq
    %v76 = vshrl.u32 %v75, 7
    %v78 = vsel %vm51, 0.0, 0
    %80 = vmatpush.msra.mxu0 0.0
    %81 = vmatpush.msra.mxu0 0.0
    %82 = vmatpush.msra.mxu0 0.0
    %83 = vmatpush.msra.mxu0 0.0
    %84 = vmatpush.msra.mxu0 0.0
    %85 = vmatpush.msra.mxu0 0.0
    %86 = vmatpush.msra.mxu0 0.0
    %87 = vmatpush.msra.mxu0 0.0
    %88 = vmatpush.msra.mxu0 0.0
    %89 = vmatpush.msra.mxu0 0.0
    %90 = vmatpush.msra.mxu0 0.0
    %91 = vmatpush.msra.mxu0 0.0
    %92 = vmatpush.msra.mxu0 %v40
    %93 = vmatpush.msra.mxu0 %v39
    %94 = vmatpush.msra.mxu0 %v38
    %95 = vmatpush.msra.mxu0 %v37
    %96 = vmatmul.f32.gmra.mxu0 %v78
    %v97 = vpop.f32.mrf.mxu0
    %v98 = vadd.f32 %v42, %v97
    %99 = vdwg.mxu0
    %100 = vmatpush.msra.mxu0 0.0
    %101 = vmatpush.msra.mxu0 0.0
    %102 = vmatpush.msra.mxu0 0.0
    %103 = vmatpush.msra.mxu0 0.0
    %104 = vmatpush.msra.mxu0 0.0
    %105 = vmatpush.msra.mxu0 0.0
    %106 = vmatpush.msra.mxu0 0.0
    %107 = vmatpush.msra.mxu0 0.0
    %108 = vmatpush.msra.mxu0 0.0
    %109 = vmatpush.msra.mxu0 0.0
    %110 = vmatpush.msra.mxu0 0.0
    %111 = vmatpush.msra.mxu0 0.0
    %112 = vmatpush.msra.mxu0 %v32
    %113 = vmatpush.msra.mxu0 %v31
    %114 = vmatpush.msra.mxu0 %v30
    %115 = vmatpush.msra.mxu0 %v29
    %116 = vmatmul.f32.gmra.mxu0 %v78
    %v117 = vpop.f32.mrf.mxu0
    %v118 = vadd.f32 0.0, %v117
    %119 = vdwg.mxu0
    %v120 = vadd.f32 %v73, %v118
    %v121 = vxor.u32 %v120, 2147483648
    %v122 = vmul.f32 %v121, 1.442695
    %v123 = vpow.pop %v122
    %v124 = vadd.f32 %v123, 1.0
    %v125 = vrcp.pop %v124
    %v126 = vmul.f32 %v124, %v125
    %v127 = vsub.f32 1.0, %v126
    %v128 = vmul.f32 %v125, %v127
    %v129 = vadd.f32 %v125, %v128
    %vm130 = vweird.f32 %v124
    %vm131 = vweird.f32 %v125
    %vm132 = vmor %vm130, %vm131
    %v133 = vsel %vm132, %v125, %v129
    %v134 = vand.u32 2147483647, %v124
    %vm135 = vcmp.eq.f32.partialorder %v134, 8.507059e+37
    %v136 = vand.u32 %v124, 2147483648
    %v137 = vor.u32 1.1754944e-38, %v136
    %v138 = vsel %vm135, %v137, %v133
    %v139 = vmul.f32 1.0, %v138
    %v140 = vtanh.pop %v120
    %v141 = vmul.f32 %v139, 0.0
    %143 = vrot.lane.b32.xlu0 %v140, 64
    %v144 = vpop.permute.xlu0 %143
    %v146 = vmul.f32 %v139, %v144
    %148 = vrot.lane.b32.xlu0 %v146, 32
    %v149 = vpop.permute.xlu0 %148
    %v151 = vadd.f32 %v141, %v149
    %v152 = vtanh.pop %v151
    %154 = vrot.lane.b32.xlu0 %v152, 64
    %v155 = vpop.permute.xlu0 %154
    %v157 = vmul.f32 %v139, %v155
    %159 = vrot.lane.b32.xlu0 %v157, 32
    %v160 = vpop.permute.xlu0 %159
    %v161 = vsel %vm51, %v160, 0
    %163 = vmatpush.msra.mxu0 0.0
    %164 = vmatpush.msra.mxu0 0.0
    %165 = vmatpush.msra.mxu0 0.0
    %166 = vmatpush.msra.mxu0 0.0
    %167 = vmatpush.msra.mxu0 0.0
    %168 = vmatpush.msra.mxu0 0.0
    %169 = vmatpush.msra.mxu0 0.0
    %170 = vmatpush.msra.mxu0 0.0
    %171 = vmatpush.msra.mxu0 0.0
    %172 = vmatpush.msra.mxu0 0.0
    %173 = vmatpush.msra.mxu0 0.0
    %174 = vmatpush.msra.mxu0 0.0
    %175 = vmatpush.msra.mxu0 %v36
    %176 = vmatpush.msra.mxu0 %v35
    %177 = vmatpush.msra.mxu0 %v34
    %178 = vmatpush.msra.mxu0 %v33
    %179 = vmatmul.f32.gmra.mxu0 %v161
    %v180 = vpop.f32.mrf.mxu0
    %v181 = vadd.f32 %v98, %v180
    %182 = vdwg.mxu0
    %v183 = vxor.u32 %v181, 2147483648
    %v184 = vmul.f32 %v183, 1.442695
    %v185 = vpow.pop %v184
    %v186 = vadd.f32 %v185, 1.0
    %v187 = vrcp.pop %v186
    %v188 = vmul.f32 %v186, %v187
    %v189 = vsub.f32 1.0, %v188
    %v190 = vmul.f32 %v187, %v189
    %v191 = vadd.f32 %v187, %v190
    %vm192 = vweird.f32 %v186
    %vm193 = vweird.f32 %v187
    %vm194 = vmor %vm192, %vm193
    %v195 = vsel %vm194, %v187, %v191
    %v196 = vand.u32 2147483647, %v186
    %vm197 = vcmp.eq.f32.partialorder %v196, 8.507059e+37
    %v198 = vand.u32 %v186, 2147483648
    %v199 = vor.u32 1.1754944e-38, %v198
    %v200 = vsel %vm197, %v199, %v195
    %v201 = vmul.f32 1.0, %v200
    %v202 = vtanh.pop %v181
    %v203 = vmul.f32 %v201, 0.0
    %205 = vrot.lane.b32.xlu0 %v202, 64
    %v206 = vpop.permute.xlu0 %205
    %v208 = vmul.f32 %v201, %v206
    %210 = vrot.lane.b32.xlu0 %v208, 32
    %v211 = vpop.permute.xlu0 %210
    %v213 = vadd.f32 %v203, %v211
    %v214 = vtanh.pop %v213
    %216 = vrot.lane.b32.xlu0 %v214, 64
    %v217 = vpop.permute.xlu0 %216
    %v219 = vmul.f32 %v201, %v217
    %vm220 = vcmp.eq.s32.totalorder %v76, 0
    %v221 = vperm.slane %v219, 0
    %v222 = vsel %vm220, %v221, 0.0
    %224 = vrot.lane.b32.xlu0 %v219, 32
    %v225 = vpop.permute.xlu0 %224
    %v226 = vsel %vm51, %v225, 0
    %228 = vmatpush.msra.mxu0 0.0
    %229 = vmatpush.msra.mxu0 0.0
    %230 = vmatpush.msra.mxu0 0.0
    %231 = vmatpush.msra.mxu0 0.0
    %232 = vmatpush.msra.mxu0 0.0
    %233 = vmatpush.msra.mxu0 0.0
    %234 = vmatpush.msra.mxu0 0.0
    %235 = vmatpush.msra.mxu0 0.0
    %236 = vmatpush.msra.mxu0 0.0
    %237 = vmatpush.msra.mxu0 0.0
    %238 = vmatpush.msra.mxu0 0.0
    %239 = vmatpush.msra.mxu0 0.0
    %240 = vmatpush.msra.mxu0 %v40
    %241 = vmatpush.msra.mxu0 %v39
    %242 = vmatpush.msra.mxu0 %v38
    %243 = vmatpush.msra.mxu0 %v37
    %244 = vmatmul.f32.gmra.mxu0 %v226
    %v245 = vpop.f32.mrf.mxu0
    %v246 = vadd.f32 %v42, %v245
    %247 = vdwg.mxu0
    %248 = vmatpush.msra.mxu0 0.0
    %249 = vmatpush.msra.mxu0 0.0
    %250 = vmatpush.msra.mxu0 0.0
    %251 = vmatpush.msra.mxu0 0.0
    %252 = vmatpush.msra.mxu0 0.0
    %253 = vmatpush.msra.mxu0 0.0
    %254 = vmatpush.msra.mxu0 0.0
    %255 = vmatpush.msra.mxu0 0.0
    %256 = vmatpush.msra.mxu0 0.0
    %257 = vmatpush.msra.mxu0 0.0
    %258 = vmatpush.msra.mxu0 0.0
    %259 = vmatpush.msra.mxu0 0.0
    %260 = vmatpush.msra.mxu0 %v32
    %261 = vmatpush.msra.mxu0 %v31
    %262 = vmatpush.msra.mxu0 %v30
    %263 = vmatpush.msra.mxu0 %v29
    %264 = vmatmul.f32.gmra.mxu0 %v161
    %v265 = vpop.f32.mrf.mxu0
    %v266 = vadd.f32 0.0, %v265
    %267 = vdwg.mxu0
    %v269 = vrot.slane %v266, 7
    %v271 = vadd.f32 %v73, %v269
    %v272 = vxor.u32 %v271, 2147483648
    %v273 = vmul.f32 %v272, 1.442695
    %v274 = vpow.pop %v273
    %v275 = vadd.f32 %v274, 1.0
    %v276 = vrcp.pop %v275
    %v277 = vmul.f32 %v275, %v276
    %v278 = vsub.f32 1.0, %v277
    %v279 = vmul.f32 %v276, %v278
    %v280 = vadd.f32 %v276, %v279
    %vm281 = vweird.f32 %v275
    %vm282 = vweird.f32 %v276
    %vm283 = vmor %vm281, %vm282
    %v284 = vsel %vm283, %v276, %v280
    %v285 = vand.u32 2147483647, %v275
    %vm286 = vcmp.eq.f32.partialorder %v285, 8.507059e+37
    %v287 = vand.u32 %v275, 2147483648
    %v288 = vor.u32 1.1754944e-38, %v287
    %v289 = vsel %vm286, %v288, %v284
    %v290 = vmul.f32 1.0, %v289
    %v291 = vtanh.pop %v271
    %v293 = vrot.slane %v151, 7
    %v295 = vmul.f32 %v290, %v293
    %297 = vrot.lane.b32.xlu0 %v291, 64
    %v298 = vpop.permute.xlu0 %297
    %v300 = vmul.f32 %v290, %v298
    %302 = vrot.lane.b32.xlu0 %v300, 32
    %v303 = vpop.permute.xlu0 %302
    %v305 = vadd.f32 %v295, %v303
    %v306 = vtanh.pop %v305
    %308 = vrot.lane.b32.xlu0 %v306, 64
    %v309 = vpop.permute.xlu0 %308
    %v311 = vmul.f32 %v290, %v309
    %v313 = vrot.slane %v311, 1
    %314 = vrot.lane.b32.xlu0 %v313, 32
    %v315 = vpop.permute.xlu0 %314
    %v316 = vsel %vm51, %v315, 0
    %318 = vmatpush.msra.mxu0 0.0
    %319 = vmatpush.msra.mxu0 0.0
    %320 = vmatpush.msra.mxu0 0.0
    %321 = vmatpush.msra.mxu0 0.0
    %322 = vmatpush.msra.mxu0 0.0
    %323 = vmatpush.msra.mxu0 0.0
    %324 = vmatpush.msra.mxu0 0.0
    %325 = vmatpush.msra.mxu0 0.0
    %326 = vmatpush.msra.mxu0 0.0
    %327 = vmatpush.msra.mxu0 0.0
    %328 = vmatpush.msra.mxu0 0.0
    %329 = vmatpush.msra.mxu0 0.0
    %330 = vmatpush.msra.mxu0 %v36
    %331 = vmatpush.msra.mxu0 %v35
    %332 = vmatpush.msra.mxu0 %v34
    %333 = vmatpush.msra.mxu0 %v33
    %334 = vmatmul.f32.gmra.mxu0 %v316
    %v335 = vpop.f32.mrf.mxu0
    %v336 = vadd.f32 %v246, %v335
    %337 = vdwg.mxu0
    %v338 = vxor.u32 %v336, 2147483648
    %v339 = vmul.f32 %v338, 1.442695
    %v340 = vpow.pop %v339
    %v341 = vadd.f32 %v340, 1.0
    %v342 = vrcp.pop %v341
    %v343 = vmul.f32 %v341, %v342
    %v344 = vsub.f32 1.0, %v343
    %v345 = vmul.f32 %v342, %v344
    %v346 = vadd.f32 %v342, %v345
    %vm347 = vweird.f32 %v341
    %vm348 = vweird.f32 %v342
    %vm349 = vmor %vm347, %vm348
    %v350 = vsel %vm349, %v342, %v346
    %v351 = vand.u32 2147483647, %v341
    %vm352 = vcmp.eq.f32.partialorder %v351, 8.507059e+37
    %v353 = vand.u32 %v341, 2147483648
    %v354 = vor.u32 1.1754944e-38, %v353
    %v355 = vsel %vm352, %v354, %v350
    %v356 = vmul.f32 1.0, %v355
    %v357 = vtanh.pop %v336
    %v358 = vmul.f32 %v356, %v213
    %360 = vrot.lane.b32.xlu0 %v357, 64
    %v361 = vpop.permute.xlu0 %360
    %v363 = vmul.f32 %v356, %v361
    %365 = vrot.lane.b32.xlu0 %v363, 32
    %v366 = vpop.permute.xlu0 %365
    %v368 = vadd.f32 %v358, %v366
    %v369 = vtanh.pop %v368
    %371 = vrot.lane.b32.xlu0 %v369, 64
    %v372 = vpop.permute.xlu0 %371
    %v374 = vmul.f32 %v356, %v372
    %vm375 = vcmp.eq.s32.totalorder %v76, 1
    %v376 = vperm.slane %v374, 0
    %v377 = vsel %vm375, %v376, %v222
    %379 = vrot.lane.b32.xlu0 %v374, 32
    %v380 = vpop.permute.xlu0 %379
    %v381 = vsel %vm51, %v380, 0
    %383 = vmatpush.msra.mxu0 0.0
    %384 = vmatpush.msra.mxu0 0.0
    %385 = vmatpush.msra.mxu0 0.0
    %386 = vmatpush.msra.mxu0 0.0
    %387 = vmatpush.msra.mxu0 0.0
    %388 = vmatpush.msra.mxu0 0.0
    %389 = vmatpush.msra.mxu0 0.0
    %390 = vmatpush.msra.mxu0 0.0
    %391 = vmatpush.msra.mxu0 0.0
    %392 = vmatpush.msra.mxu0 0.0
    %393 = vmatpush.msra.mxu0 0.0
    %394 = vmatpush.msra.mxu0 0.0
    %395 = vmatpush.msra.mxu0 %v40
    %396 = vmatpush.msra.mxu0 %v39
    %397 = vmatpush.msra.mxu0 %v38
    %398 = vmatpush.msra.mxu0 %v37
    %399 = vmatmul.f32.gmra.mxu0 %v381
    %v400 = vpop.f32.mrf.mxu0
    %v401 = vadd.f32 %v42, %v400
    %402 = vdwg.mxu0
    %403 = vmatpush.msra.mxu0 0.0
    %404 = vmatpush.msra.mxu0 0.0
    %405 = vmatpush.msra.mxu0 0.0
    %406 = vmatpush.msra.mxu0 0.0
    %407 = vmatpush.msra.mxu0 0.0
    %408 = vmatpush.msra.mxu0 0.0
    %409 = vmatpush.msra.mxu0 0.0
    %410 = vmatpush.msra.mxu0 0.0
    %411 = vmatpush.msra.mxu0 0.0
    %412 = vmatpush.msra.mxu0 0.0
    %413 = vmatpush.msra.mxu0 0.0
    %414 = vmatpush.msra.mxu0 0.0
    %415 = vmatpush.msra.mxu0 %v32
    %416 = vmatpush.msra.mxu0 %v31
    %417 = vmatpush.msra.mxu0 %v30
    %418 = vmatpush.msra.mxu0 %v29
    %419 = vmatmul.f32.gmra.mxu0 %v316
    %v420 = vpop.f32.mrf.mxu0
    %v421 = vadd.f32 0.0, %v420
    %422 = vdwg.mxu0
    %v424 = vrot.slane %v421, 6
    %v426 = vadd.f32 %v73, %v424
    %v427 = vxor.u32 %v426, 2147483648
    %v428 = vmul.f32 %v427, 1.442695
    %v429 = vpow.pop %v428
    %v430 = vadd.f32 %v429, 1.0
    %v431 = vrcp.pop %v430
    %v432 = vmul.f32 %v430, %v431
    %v433 = vsub.f32 1.0, %v432
    %v434 = vmul.f32 %v431, %v433
    %v435 = vadd.f32 %v431, %v434
    %vm436 = vweird.f32 %v430
    %vm437 = vweird.f32 %v431
    %vm438 = vmor %vm436, %vm437
    %v439 = vsel %vm438, %v431, %v435
    %v440 = vand.u32 2147483647, %v430
    %vm441 = vcmp.eq.f32.partialorder %v440, 8.507059e+37
    %v442 = vand.u32 %v430, 2147483648
    %v443 = vor.u32 1.1754944e-38, %v442
    %v444 = vsel %vm441, %v443, %v439
    %v445 = vmul.f32 1.0, %v444
    %v446 = vtanh.pop %v426
    %v448 = vrot.slane %v305, 7
    %v450 = vmul.f32 %v445, %v448
    %452 = vrot.lane.b32.xlu0 %v446, 64
    %v453 = vpop.permute.xlu0 %452
    %v455 = vmul.f32 %v445, %v453
    %457 = vrot.lane.b32.xlu0 %v455, 32
    %v458 = vpop.permute.xlu0 %457
    %v460 = vadd.f32 %v450, %v458
    %v461 = vtanh.pop %v460
    %463 = vrot.lane.b32.xlu0 %v461, 64
    %v464 = vpop.permute.xlu0 %463
    %v466 = vmul.f32 %v445, %v464
    %v468 = vrot.slane %v466, 2
    %469 = vrot.lane.b32.xlu0 %v468, 32
    %v470 = vpop.permute.xlu0 %469
    %v471 = vsel %vm51, %v470, 0
    %473 = vmatpush.msra.mxu0 0.0
    %474 = vmatpush.msra.mxu0 0.0
    %475 = vmatpush.msra.mxu0 0.0
    %476 = vmatpush.msra.mxu0 0.0
    %477 = vmatpush.msra.mxu0 0.0
    %478 = vmatpush.msra.mxu0 0.0
    %479 = vmatpush.msra.mxu0 0.0
    %480 = vmatpush.msra.mxu0 0.0
    %481 = vmatpush.msra.mxu0 0.0
    %482 = vmatpush.msra.mxu0 0.0
    %483 = vmatpush.msra.mxu0 0.0
    %484 = vmatpush.msra.mxu0 0.0
    %485 = vmatpush.msra.mxu0 %v36
    %486 = vmatpush.msra.mxu0 %v35
    %487 = vmatpush.msra.mxu0 %v34
    %488 = vmatpush.msra.mxu0 %v33
    %489 = vmatmul.f32.gmra.mxu0 %v471
    %v490 = vpop.f32.mrf.mxu0
    %v491 = vadd.f32 %v401, %v490
    %492 = vdwg.mxu0
    %v493 = vxor.u32 %v491, 2147483648
    %v494 = vmul.f32 %v493, 1.442695
    %v495 = vpow.pop %v494
    %v496 = vadd.f32 %v495, 1.0
    %v497 = vrcp.pop %v496
    %v498 = vmul.f32 %v496, %v497
    %v499 = vsub.f32 1.0, %v498
    %v500 = vmul.f32 %v497, %v499
    %v501 = vadd.f32 %v497, %v500
    %vm502 = vweird.f32 %v496
    %vm503 = vweird.f32 %v497
    %vm504 = vmor %vm502, %vm503
    %v505 = vsel %vm504, %v497, %v501
    %v506 = vand.u32 2147483647, %v496
    %vm507 = vcmp.eq.f32.partialorder %v506, 8.507059e+37
    %v508 = vand.u32 %v496, 2147483648
    %v509 = vor.u32 1.1754944e-38, %v508
    %v510 = vsel %vm507, %v509, %v505
    %v511 = vmul.f32 1.0, %v510
    %v512 = vtanh.pop %v491
    %v513 = vmul.f32 %v511, %v368
    %515 = vrot.lane.b32.xlu0 %v512, 64
    %v516 = vpop.permute.xlu0 %515
    %v518 = vmul.f32 %v511, %v516
    %520 = vrot.lane.b32.xlu0 %v518, 32
    %v521 = vpop.permute.xlu0 %520
    %v523 = vadd.f32 %v513, %v521
    %v524 = vtanh.pop %v523
    %526 = vrot.lane.b32.xlu0 %v524, 64
    %v527 = vpop.permute.xlu0 %526
    %v529 = vmul.f32 %v511, %v527
    %vm530 = vcmp.eq.s32.totalorder %v76, 2
    %v531 = vperm.slane %v529, 0
    %v532 = vsel %vm530, %v531, %v377
    %534 = vrot.lane.b32.xlu0 %v529, 32
    %v535 = vpop.permute.xlu0 %534
    %v536 = vsel %vm51, %v535, 0
    %538 = vmatpush.msra.mxu0 0.0
    %539 = vmatpush.msra.mxu0 0.0
    %540 = vmatpush.msra.mxu0 0.0
    %541 = vmatpush.msra.mxu0 0.0
    %542 = vmatpush.msra.mxu0 0.0
    %543 = vmatpush.msra.mxu0 0.0
    %544 = vmatpush.msra.mxu0 0.0
    %545 = vmatpush.msra.mxu0 0.0
    %546 = vmatpush.msra.mxu0 0.0
    %547 = vmatpush.msra.mxu0 0.0
    %548 = vmatpush.msra.mxu0 0.0
    %549 = vmatpush.msra.mxu0 0.0
    %550 = vmatpush.msra.mxu0 %v40
    %551 = vmatpush.msra.mxu0 %v39
    %552 = vmatpush.msra.mxu0 %v38
    %553 = vmatpush.msra.mxu0 %v37
    %554 = vmatmul.f32.gmra.mxu0 %v536
    %v555 = vpop.f32.mrf.mxu0
    %v556 = vadd.f32 %v42, %v555
    %557 = vdwg.mxu0
    %558 = vmatpush.msra.mxu0 0.0
    %559 = vmatpush.msra.mxu0 0.0
    %560 = vmatpush.msra.mxu0 0.0
    %561 = vmatpush.msra.mxu0 0.0
    %562 = vmatpush.msra.mxu0 0.0
    %563 = vmatpush.msra.mxu0 0.0
    %564 = vmatpush.msra.mxu0 0.0
    %565 = vmatpush.msra.mxu0 0.0
    %566 = vmatpush.msra.mxu0 0.0
    %567 = vmatpush.msra.mxu0 0.0
    %568 = vmatpush.msra.mxu0 0.0
    %569 = vmatpush.msra.mxu0 0.0
    %570 = vmatpush.msra.mxu0 %v32
    %571 = vmatpush.msra.mxu0 %v31
    %572 = vmatpush.msra.mxu0 %v30
    %573 = vmatpush.msra.mxu0 %v29
    %574 = vmatmul.f32.gmra.mxu0 %v471
    %v575 = vpop.f32.mrf.mxu0
    %v576 = vadd.f32 0.0, %v575
    %577 = vdwg.mxu0
    %v579 = vrot.slane %v576, 5
    %v581 = vadd.f32 %v73, %v579
    %v582 = vxor.u32 %v581, 2147483648
    %v583 = vmul.f32 %v582, 1.442695
    %v584 = vpow.pop %v583
    %v585 = vadd.f32 %v584, 1.0
    %v586 = vrcp.pop %v585
    %v587 = vmul.f32 %v585, %v586
    %v588 = vsub.f32 1.0, %v587
    %v589 = vmul.f32 %v586, %v588
    %v590 = vadd.f32 %v586, %v589
    %vm591 = vweird.f32 %v585
    %vm592 = vweird.f32 %v586
    %vm593 = vmor %vm591, %vm592
    %v594 = vsel %vm593, %v586, %v590
    %v595 = vand.u32 2147483647, %v585
    %vm596 = vcmp.eq.f32.partialorder %v595, 8.507059e+37
    %v597 = vand.u32 %v585, 2147483648
    %v598 = vor.u32 1.1754944e-38, %v597
    %v599 = vsel %vm596, %v598, %v594
    %v600 = vmul.f32 1.0, %v599
    %v601 = vtanh.pop %v581
    %v603 = vrot.slane %v460, 7
    %v605 = vmul.f32 %v600, %v603
    %607 = vrot.lane.b32.xlu0 %v601, 64
    %v608 = vpop.permute.xlu0 %607
    %v610 = vmul.f32 %v600, %v608
    %612 = vrot.lane.b32.xlu0 %v610, 32
    %v613 = vpop.permute.xlu0 %612
    %v615 = vadd.f32 %v605, %v613
    %v616 = vtanh.pop %v615
    %618 = vrot.lane.b32.xlu0 %v616, 64
    %v619 = vpop.permute.xlu0 %618
    %v621 = vmul.f32 %v600, %v619
    %v623 = vrot.slane %v621, 3
    %624 = vrot.lane.b32.xlu0 %v623, 32
    %v625 = vpop.permute.xlu0 %624
    %v626 = vsel %vm51, %v625, 0
    %628 = vmatpush.msra.mxu0 0.0
    %629 = vmatpush.msra.mxu0 0.0
    %630 = vmatpush.msra.mxu0 0.0
    %631 = vmatpush.msra.mxu0 0.0
    %632 = vmatpush.msra.mxu0 0.0
    %633 = vmatpush.msra.mxu0 0.0
    %634 = vmatpush.msra.mxu0 0.0
    %635 = vmatpush.msra.mxu0 0.0
    %636 = vmatpush.msra.mxu0 0.0
    %637 = vmatpush.msra.mxu0 0.0
    %638 = vmatpush.msra.mxu0 0.0
    %639 = vmatpush.msra.mxu0 0.0
    %640 = vmatpush.msra.mxu0 %v36
    %641 = vmatpush.msra.mxu0 %v35
    %642 = vmatpush.msra.mxu0 %v34
    %643 = vmatpush.msra.mxu0 %v33
    %644 = vmatmul.f32.gmra.mxu0 %v626
    %v645 = vpop.f32.mrf.mxu0
    %v646 = vadd.f32 %v556, %v645
    %647 = vdwg.mxu0
    %v648 = vxor.u32 %v646, 2147483648
    %v649 = vmul.f32 %v648, 1.442695
    %v650 = vpow.pop %v649
    %v651 = vadd.f32 %v650, 1.0
    %v652 = vrcp.pop %v651
    %v653 = vmul.f32 %v651, %v652
    %v654 = vsub.f32 1.0, %v653
    %v655 = vmul.f32 %v652, %v654
    %v656 = vadd.f32 %v652, %v655
    %vm657 = vweird.f32 %v651
    %vm658 = vweird.f32 %v652
    %vm659 = vmor %vm657, %vm658
    %v660 = vsel %vm659, %v652, %v656
    %v661 = vand.u32 2147483647, %v651
    %vm662 = vcmp.eq.f32.partialorder %v661, 8.507059e+37
    %v663 = vand.u32 %v651, 2147483648
    %v664 = vor.u32 1.1754944e-38, %v663
    %v665 = vsel %vm662, %v664, %v660
    %v666 = vmul.f32 1.0, %v665
    %v667 = vtanh.pop %v646
    %v668 = vmul.f32 %v666, %v523
    %670 = vrot.lane.b32.xlu0 %v667, 64
    %v671 = vpop.permute.xlu0 %670
    %v673 = vmul.f32 %v666, %v671
    %675 = vrot.lane.b32.xlu0 %v673, 32
    %v676 = vpop.permute.xlu0 %675
    %v678 = vadd.f32 %v668, %v676
    %v679 = vtanh.pop %v678
    %681 = vrot.lane.b32.xlu0 %v679, 64
    %v682 = vpop.permute.xlu0 %681
    %v684 = vmul.f32 %v666, %v682
    %vm685 = vcmp.eq.s32.totalorder %v76, 3
    %v686 = vperm.slane %v684, 0
    %v687 = vsel %vm685, %v686, %v532
    %689 = vrot.lane.b32.xlu0 %v684, 32
    %v690 = vpop.permute.xlu0 %689
    %v691 = vsel %vm51, %v690, 0
    %693 = vmatpush.msra.mxu0 0.0
    %694 = vmatpush.msra.mxu0 0.0
    %695 = vmatpush.msra.mxu0 0.0
    %696 = vmatpush.msra.mxu0 0.0
    %697 = vmatpush.msra.mxu0 0.0
    %698 = vmatpush.msra.mxu0 0.0
    %699 = vmatpush.msra.mxu0 0.0
    %700 = vmatpush.msra.mxu0 0.0
    %701 = vmatpush.msra.mxu0 0.0
    %702 = vmatpush.msra.mxu0 0.0
    %703 = vmatpush.msra.mxu0 0.0
    %704 = vmatpush.msra.mxu0 0.0
    %705 = vmatpush.msra.mxu0 %v40
    %706 = vmatpush.msra.mxu0 %v39
    %707 = vmatpush.msra.mxu0 %v38
    %708 = vmatpush.msra.mxu0 %v37
    %709 = vmatmul.f32.gmra.mxu0 %v691
    %v710 = vpop.f32.mrf.mxu0
    %v711 = vadd.f32 %v42, %v710
    %712 = vdwg.mxu0
    %713 = vmatpush.msra.mxu0 0.0
    %714 = vmatpush.msra.mxu0 0.0
    %715 = vmatpush.msra.mxu0 0.0
    %716 = vmatpush.msra.mxu0 0.0
    %717 = vmatpush.msra.mxu0 0.0
    %718 = vmatpush.msra.mxu0 0.0
    %719 = vmatpush.msra.mxu0 0.0
    %720 = vmatpush.msra.mxu0 0.0
    %721 = vmatpush.msra.mxu0 0.0
    %722 = vmatpush.msra.mxu0 0.0
    %723 = vmatpush.msra.mxu0 0.0
    %724 = vmatpush.msra.mxu0 0.0
    %725 = vmatpush.msra.mxu0 %v32
    %726 = vmatpush.msra.mxu0 %v31
    %727 = vmatpush.msra.mxu0 %v30
    %728 = vmatpush.msra.mxu0 %v29
    %729 = vmatmul.f32.gmra.mxu0 %v626
    %v730 = vpop.f32.mrf.mxu0
    %v731 = vadd.f32 0.0, %v730
    %732 = vdwg.mxu0
    %v734 = vrot.slane %v731, 4
    %v736 = vadd.f32 %v73, %v734
    %v737 = vxor.u32 %v736, 2147483648
    %v738 = vmul.f32 %v737, 1.442695
    %v739 = vpow.pop %v738
    %v740 = vadd.f32 %v739, 1.0
    %v741 = vrcp.pop %v740
    %v742 = vmul.f32 %v740, %v741
    %v743 = vsub.f32 1.0, %v742
    %v744 = vmul.f32 %v741, %v743
    %v745 = vadd.f32 %v741, %v744
    %vm746 = vweird.f32 %v740
    %vm747 = vweird.f32 %v741
    %vm748 = vmor %vm746, %vm747
    %v749 = vsel %vm748, %v741, %v745
    %v750 = vand.u32 2147483647, %v740
    %vm751 = vcmp.eq.f32.partialorder %v750, 8.507059e+37
    %v752 = vand.u32 %v740, 2147483648
    %v753 = vor.u32 1.1754944e-38, %v752
    %v754 = vsel %vm751, %v753, %v749
    %v755 = vmul.f32 1.0, %v754
    %v756 = vtanh.pop %v736
    %v758 = vrot.slane %v615, 7
    %v760 = vmul.f32 %v755, %v758
    %762 = vrot.lane.b32.xlu0 %v756, 64
    %v763 = vpop.permute.xlu0 %762
    %v765 = vmul.f32 %v755, %v763
    %767 = vrot.lane.b32.xlu0 %v765, 32
    %v768 = vpop.permute.xlu0 %767
    %v770 = vadd.f32 %v760, %v768
    %v771 = vtanh.pop %v770
    %773 = vrot.lane.b32.xlu0 %v771, 64
    %v774 = vpop.permute.xlu0 %773
    %v776 = vmul.f32 %v755, %v774
    %v778 = vrot.slane %v776, 4
    %779 = vrot.lane.b32.xlu0 %v778, 32
    %v780 = vpop.permute.xlu0 %779
    %v781 = vsel %vm51, %v780, 0
    %783 = vmatpush.msra.mxu0 0.0
    %784 = vmatpush.msra.mxu0 0.0
    %785 = vmatpush.msra.mxu0 0.0
    %786 = vmatpush.msra.mxu0 0.0
    %787 = vmatpush.msra.mxu0 0.0
    %788 = vmatpush.msra.mxu0 0.0
    %789 = vmatpush.msra.mxu0 0.0
    %790 = vmatpush.msra.mxu0 0.0
    %791 = vmatpush.msra.mxu0 0.0
    %792 = vmatpush.msra.mxu0 0.0
    %793 = vmatpush.msra.mxu0 0.0
    %794 = vmatpush.msra.mxu0 0.0
    %795 = vmatpush.msra.mxu0 %v36
    %796 = vmatpush.msra.mxu0 %v35
    %797 = vmatpush.msra.mxu0 %v34
    %798 = vmatpush.msra.mxu0 %v33
    %799 = vmatmul.f32.gmra.mxu0 %v781
    %v800 = vpop.f32.mrf.mxu0
    %v801 = vadd.f32 %v711, %v800
    %802 = vdwg.mxu0
    %v803 = vxor.u32 %v801, 2147483648
    %v804 = vmul.f32 %v803, 1.442695
    %v805 = vpow.pop %v804
    %v806 = vadd.f32 %v805, 1.0
    %v807 = vrcp.pop %v806
    %v808 = vmul.f32 %v806, %v807
    %v809 = vsub.f32 1.0, %v808
    %v810 = vmul.f32 %v807, %v809
    %v811 = vadd.f32 %v807, %v810
    %vm812 = vweird.f32 %v806
    %vm813 = vweird.f32 %v807
    %vm814 = vmor %vm812, %vm813
    %v815 = vsel %vm814, %v807, %v811
    %v816 = vand.u32 2147483647, %v806
    %vm817 = vcmp.eq.f32.partialorder %v816, 8.507059e+37
    %v818 = vand.u32 %v806, 2147483648
    %v819 = vor.u32 1.1754944e-38, %v818
    %v820 = vsel %vm817, %v819, %v815
    %v821 = vmul.f32 1.0, %v820
    %v822 = vtanh.pop %v801
    %v823 = vmul.f32 %v821, %v678
    %825 = vrot.lane.b32.xlu0 %v822, 64
    %v826 = vpop.permute.xlu0 %825
    %v828 = vmul.f32 %v821, %v826
    %830 = vrot.lane.b32.xlu0 %v828, 32
    %v831 = vpop.permute.xlu0 %830
    %v833 = vadd.f32 %v823, %v831
    %v834 = vtanh.pop %v833
    %836 = vrot.lane.b32.xlu0 %v834, 64
    %v837 = vpop.permute.xlu0 %836
    %v839 = vmul.f32 %v821, %v837
    %vm840 = vcmp.eq.s32.totalorder %v76, 4
    %v841 = vperm.slane %v839, 0
    %v842 = vsel %vm840, %v841, %v687
    %844 = vrot.lane.b32.xlu0 %v839, 32
    %v845 = vpop.permute.xlu0 %844
    %v846 = vsel %vm51, %v845, 0
    %848 = vmatpush.msra.mxu0 0.0
    %849 = vmatpush.msra.mxu0 0.0
    %850 = vmatpush.msra.mxu0 0.0
    %851 = vmatpush.msra.mxu0 0.0
    %852 = vmatpush.msra.mxu0 0.0
    %853 = vmatpush.msra.mxu0 0.0
    %854 = vmatpush.msra.mxu0 0.0
    %855 = vmatpush.msra.mxu0 0.0
    %856 = vmatpush.msra.mxu0 0.0
    %857 = vmatpush.msra.mxu0 0.0
    %858 = vmatpush.msra.mxu0 0.0
    %859 = vmatpush.msra.mxu0 0.0
    %860 = vmatpush.msra.mxu0 %v40
    %861 = vmatpush.msra.mxu0 %v39
    %862 = vmatpush.msra.mxu0 %v38
    %863 = vmatpush.msra.mxu0 %v37
    %864 = vmatmul.f32.gmra.mxu0 %v846
    %v865 = vpop.f32.mrf.mxu0
    %v866 = vadd.f32 %v42, %v865
    %867 = vdwg.mxu0
    %868 = vmatpush.msra.mxu0 0.0
    %869 = vmatpush.msra.mxu0 0.0
    %870 = vmatpush.msra.mxu0 0.0
    %871 = vmatpush.msra.mxu0 0.0
    %872 = vmatpush.msra.mxu0 0.0
    %873 = vmatpush.msra.mxu0 0.0
    %874 = vmatpush.msra.mxu0 0.0
    %875 = vmatpush.msra.mxu0 0.0
    %876 = vmatpush.msra.mxu0 0.0
    %877 = vmatpush.msra.mxu0 0.0
    %878 = vmatpush.msra.mxu0 0.0
    %879 = vmatpush.msra.mxu0 0.0
    %880 = vmatpush.msra.mxu0 %v32
    %881 = vmatpush.msra.mxu0 %v31
    %882 = vmatpush.msra.mxu0 %v30
    %883 = vmatpush.msra.mxu0 %v29
    %884 = vmatmul.f32.gmra.mxu0 %v781
    %v885 = vpop.f32.mrf.mxu0
    %v886 = vadd.f32 0.0, %v885
    %887 = vdwg.mxu0
    %v889 = vrot.slane %v886, 3
    %v891 = vadd.f32 %v73, %v889
    %v892 = vxor.u32 %v891, 2147483648
    %v893 = vmul.f32 %v892, 1.442695
    %v894 = vpow.pop %v893
    %v895 = vadd.f32 %v894, 1.0
    %v896 = vrcp.pop %v895
    %v897 = vmul.f32 %v895, %v896
    %v898 = vsub.f32 1.0, %v897
    %v899 = vmul.f32 %v896, %v898
    %v900 = vadd.f32 %v896, %v899
    %vm901 = vweird.f32 %v895
    %vm902 = vweird.f32 %v896
    %vm903 = vmor %vm901, %vm902
    %v904 = vsel %vm903, %v896, %v900
    %v905 = vand.u32 2147483647, %v895
    %vm906 = vcmp.eq.f32.partialorder %v905, 8.507059e+37
    %v907 = vand.u32 %v895, 2147483648
    %v908 = vor.u32 1.1754944e-38, %v907
    %v909 = vsel %vm906, %v908, %v904
    %v910 = vmul.f32 1.0, %v909
    %v911 = vtanh.pop %v891
    %v913 = vrot.slane %v770, 7
    %v915 = vmul.f32 %v910, %v913
    %917 = vrot.lane.b32.xlu0 %v911, 64
    %v918 = vpop.permute.xlu0 %917
    %v920 = vmul.f32 %v910, %v918
    %922 = vrot.lane.b32.xlu0 %v920, 32
    %v923 = vpop.permute.xlu0 %922
    %v925 = vadd.f32 %v915, %v923
    %v926 = vtanh.pop %v925
    %928 = vrot.lane.b32.xlu0 %v926, 64
    %v929 = vpop.permute.xlu0 %928
    %v931 = vmul.f32 %v910, %v929
    %v933 = vrot.slane %v931, 5
    %934 = vrot.lane.b32.xlu0 %v933, 32
    %v935 = vpop.permute.xlu0 %934
    %v936 = vsel %vm51, %v935, 0
    %938 = vmatpush.msra.mxu0 0.0
    %939 = vmatpush.msra.mxu0 0.0
    %940 = vmatpush.msra.mxu0 0.0
    %941 = vmatpush.msra.mxu0 0.0
    %942 = vmatpush.msra.mxu0 0.0
    %943 = vmatpush.msra.mxu0 0.0
    %944 = vmatpush.msra.mxu0 0.0
    %945 = vmatpush.msra.mxu0 0.0
    %946 = vmatpush.msra.mxu0 0.0
    %947 = vmatpush.msra.mxu0 0.0
    %948 = vmatpush.msra.mxu0 0.0
    %949 = vmatpush.msra.mxu0 0.0
    %950 = vmatpush.msra.mxu0 %v36
    %951 = vmatpush.msra.mxu0 %v35
    %952 = vmatpush.msra.mxu0 %v34
    %953 = vmatpush.msra.mxu0 %v33
    %954 = vmatmul.f32.gmra.mxu0 %v936
    %v955 = vpop.f32.mrf.mxu0
    %v956 = vadd.f32 %v866, %v955
    %957 = vdwg.mxu0
    %v958 = vxor.u32 %v956, 2147483648
    %v959 = vmul.f32 %v958, 1.442695
    %v960 = vpow.pop %v959
    %v961 = vadd.f32 %v960, 1.0
    %v962 = vrcp.pop %v961
    %v963 = vmul.f32 %v961, %v962
    %v964 = vsub.f32 1.0, %v963
    %v965 = vmul.f32 %v962, %v964
    %v966 = vadd.f32 %v962, %v965
    %vm967 = vweird.f32 %v961
    %vm968 = vweird.f32 %v962
    %vm969 = vmor %vm967, %vm968
    %v970 = vsel %vm969, %v962, %v966
    %v971 = vand.u32 2147483647, %v961
    %vm972 = vcmp.eq.f32.partialorder %v971, 8.507059e+37
    %v973 = vand.u32 %v961, 2147483648
    %v974 = vor.u32 1.1754944e-38, %v973
    %v975 = vsel %vm972, %v974, %v970
    %v976 = vmul.f32 1.0, %v975
    %v977 = vtanh.pop %v956
    %v978 = vmul.f32 %v976, %v833
    %980 = vrot.lane.b32.xlu0 %v977, 64
    %v981 = vpop.permute.xlu0 %980
    %v983 = vmul.f32 %v976, %v981
    %985 = vrot.lane.b32.xlu0 %v983, 32
    %v986 = vpop.permute.xlu0 %985
    %v988 = vadd.f32 %v978, %v986
    %v989 = vtanh.pop %v988
    %991 = vrot.lane.b32.xlu0 %v989, 64
    %v992 = vpop.permute.xlu0 %991
    %v994 = vmul.f32 %v976, %v992
    %vm995 = vcmp.eq.s32.totalorder %v76, 5
    %v996 = vperm.slane %v994, 0
    %v997 = vsel %vm995, %v996, %v842
    %999 = vrot.lane.b32.xlu0 %v994, 32
    %v1000 = vpop.permute.xlu0 %999
    %v1001 = vsel %vm51, %v1000, 0
    %1003 = vmatpush.msra.mxu0 0.0
    %1004 = vmatpush.msra.mxu0 0.0
    %1005 = vmatpush.msra.mxu0 0.0
    %1006 = vmatpush.msra.mxu0 0.0
    %1007 = vmatpush.msra.mxu0 0.0
    %1008 = vmatpush.msra.mxu0 0.0
    %1009 = vmatpush.msra.mxu0 0.0
    %1010 = vmatpush.msra.mxu0 0.0
    %1011 = vmatpush.msra.mxu0 0.0
    %1012 = vmatpush.msra.mxu0 0.0
    %1013 = vmatpush.msra.mxu0 0.0
    %1014 = vmatpush.msra.mxu0 0.0
    %1015 = vmatpush.msra.mxu0 %v40
    %1016 = vmatpush.msra.mxu0 %v39
    %1017 = vmatpush.msra.mxu0 %v38
    %1018 = vmatpush.msra.mxu0 %v37
    %1019 = vmatmul.f32.gmra.mxu0 %v1001
    %v1020 = vpop.f32.mrf.mxu0
    %v1021 = vadd.f32 %v42, %v1020
    %1022 = vdwg.mxu0
    %1023 = vmatpush.msra.mxu0 0.0
    %1024 = vmatpush.msra.mxu0 0.0
    %1025 = vmatpush.msra.mxu0 0.0
    %1026 = vmatpush.msra.mxu0 0.0
    %1027 = vmatpush.msra.mxu0 0.0
    %1028 = vmatpush.msra.mxu0 0.0
    %1029 = vmatpush.msra.mxu0 0.0
    %1030 = vmatpush.msra.mxu0 0.0
    %1031 = vmatpush.msra.mxu0 0.0
    %1032 = vmatpush.msra.mxu0 0.0
    %1033 = vmatpush.msra.mxu0 0.0
    %1034 = vmatpush.msra.mxu0 0.0
    %1035 = vmatpush.msra.mxu0 %v32
    %1036 = vmatpush.msra.mxu0 %v31
    %1037 = vmatpush.msra.mxu0 %v30
    %1038 = vmatpush.msra.mxu0 %v29
    %1039 = vmatmul.f32.gmra.mxu0 %v936
    %v1040 = vpop.f32.mrf.mxu0
    %v1041 = vadd.f32 0.0, %v1040
    %1042 = vdwg.mxu0
    %v1044 = vrot.slane %v1041, 2
    %v1046 = vadd.f32 %v73, %v1044
    %v1047 = vxor.u32 %v1046, 2147483648
    %v1048 = vmul.f32 %v1047, 1.442695
    %v1049 = vpow.pop %v1048
    %v1050 = vadd.f32 %v1049, 1.0
    %v1051 = vrcp.pop %v1050
    %v1052 = vmul.f32 %v1050, %v1051
    %v1053 = vsub.f32 1.0, %v1052
    %v1054 = vmul.f32 %v1051, %v1053
    %v1055 = vadd.f32 %v1051, %v1054
    %vm1056 = vweird.f32 %v1050
    %vm1057 = vweird.f32 %v1051
    %vm1058 = vmor %vm1056, %vm1057
    %v1059 = vsel %vm1058, %v1051, %v1055
    %v1060 = vand.u32 2147483647, %v1050
    %vm1061 = vcmp.eq.f32.partialorder %v1060, 8.507059e+37
    %v1062 = vand.u32 %v1050, 2147483648
    %v1063 = vor.u32 1.1754944e-38, %v1062
    %v1064 = vsel %vm1061, %v1063, %v1059
    %v1065 = vmul.f32 1.0, %v1064
    %v1066 = vtanh.pop %v1046
    %v1068 = vrot.slane %v925, 7
    %v1070 = vmul.f32 %v1065, %v1068
    %1072 = vrot.lane.b32.xlu0 %v1066, 64
    %v1073 = vpop.permute.xlu0 %1072
    %v1075 = vmul.f32 %v1065, %v1073
    %1077 = vrot.lane.b32.xlu0 %v1075, 32
    %v1078 = vpop.permute.xlu0 %1077
    %v1080 = vadd.f32 %v1070, %v1078
    %v1081 = vtanh.pop %v1080
    %1083 = vrot.lane.b32.xlu0 %v1081, 64
    %v1084 = vpop.permute.xlu0 %1083
    %v1086 = vmul.f32 %v1065, %v1084
    %v1088 = vrot.slane %v1086, 6
    %1089 = vrot.lane.b32.xlu0 %v1088, 32
    %v1090 = vpop.permute.xlu0 %1089
    %v1091 = vsel %vm51, %v1090, 0
    %1093 = vmatpush.msra.mxu0 0.0
    %1094 = vmatpush.msra.mxu0 0.0
    %1095 = vmatpush.msra.mxu0 0.0
    %1096 = vmatpush.msra.mxu0 0.0
    %1097 = vmatpush.msra.mxu0 0.0
    %1098 = vmatpush.msra.mxu0 0.0
    %1099 = vmatpush.msra.mxu0 0.0
    %1100 = vmatpush.msra.mxu0 0.0
    %1101 = vmatpush.msra.mxu0 0.0
    %1102 = vmatpush.msra.mxu0 0.0
    %1103 = vmatpush.msra.mxu0 0.0
    %1104 = vmatpush.msra.mxu0 0.0
    %1105 = vmatpush.msra.mxu0 %v36
    %1106 = vmatpush.msra.mxu0 %v35
    %1107 = vmatpush.msra.mxu0 %v34
    %1108 = vmatpush.msra.mxu0 %v33
    %1109 = vmatmul.f32.gmra.mxu0 %v1091
    %v1110 = vpop.f32.mrf.mxu0
    %v1111 = vadd.f32 %v1021, %v1110
    %1112 = vdwg.mxu0
    %v1113 = vxor.u32 %v1111, 2147483648
    %v1114 = vmul.f32 %v1113, 1.442695
    %v1115 = vpow.pop %v1114
    %v1116 = vadd.f32 %v1115, 1.0
    %v1117 = vrcp.pop %v1116
    %v1118 = vmul.f32 %v1116, %v1117
    %v1119 = vsub.f32 1.0, %v1118
    %v1120 = vmul.f32 %v1117, %v1119
    %v1121 = vadd.f32 %v1117, %v1120
    %vm1122 = vweird.f32 %v1116
    %vm1123 = vweird.f32 %v1117
    %vm1124 = vmor %vm1122, %vm1123
    %v1125 = vsel %vm1124, %v1117, %v1121
    %v1126 = vand.u32 2147483647, %v1116
    %vm1127 = vcmp.eq.f32.partialorder %v1126, 8.507059e+37
    %v1128 = vand.u32 %v1116, 2147483648
    %v1129 = vor.u32 1.1754944e-38, %v1128
    %v1130 = vsel %vm1127, %v1129, %v1125
    %v1131 = vmul.f32 1.0, %v1130
    %v1132 = vtanh.pop %v1111
    %v1133 = vmul.f32 %v1131, %v988
    %1135 = vrot.lane.b32.xlu0 %v1132, 64
    %v1136 = vpop.permute.xlu0 %1135
    %v1138 = vmul.f32 %v1131, %v1136
    %1140 = vrot.lane.b32.xlu0 %v1138, 32
    %v1141 = vpop.permute.xlu0 %1140
    %v1143 = vadd.f32 %v1133, %v1141
    %v1144 = vtanh.pop %v1143
    %1146 = vrot.lane.b32.xlu0 %v1144, 64
    %v1147 = vpop.permute.xlu0 %1146
    %v1149 = vmul.f32 %v1131, %v1147
    %vm1150 = vcmp.eq.s32.totalorder %v76, 6
    %v1151 = vperm.slane %v1149, 0
    %v1152 = vsel %vm1150, %v1151, %v997
    %1154 = vrot.lane.b32.xlu0 %v1149, 32
    %v1155 = vpop.permute.xlu0 %1154
    %v1156 = vsel %vm51, %v1155, 0
    %1158 = vmatpush.msra.mxu0 0.0
    %1159 = vmatpush.msra.mxu0 0.0
    %1160 = vmatpush.msra.mxu0 0.0
    %1161 = vmatpush.msra.mxu0 0.0
    %1162 = vmatpush.msra.mxu0 0.0
    %1163 = vmatpush.msra.mxu0 0.0
    %1164 = vmatpush.msra.mxu0 0.0
    %1165 = vmatpush.msra.mxu0 0.0
    %1166 = vmatpush.msra.mxu0 0.0
    %1167 = vmatpush.msra.mxu0 0.0
    %1168 = vmatpush.msra.mxu0 0.0
    %1169 = vmatpush.msra.mxu0 0.0
    %1170 = vmatpush.msra.mxu0 %v40
    %1171 = vmatpush.msra.mxu0 %v39
    %1172 = vmatpush.msra.mxu0 %v38
    %1173 = vmatpush.msra.mxu0 %v37
    %1174 = vmatmul.f32.gmra.mxu0 %v1156
    %v1175 = vpop.f32.mrf.mxu0
    %v1176 = vadd.f32 %v42, %v1175
    %1177 = vdwg.mxu0
    %1178 = vmatpush.msra.mxu0 0.0
    %1179 = vmatpush.msra.mxu0 0.0
    %1180 = vmatpush.msra.mxu0 0.0
    %1181 = vmatpush.msra.mxu0 0.0
    %1182 = vmatpush.msra.mxu0 0.0
    %1183 = vmatpush.msra.mxu0 0.0
    %1184 = vmatpush.msra.mxu0 0.0
    %1185 = vmatpush.msra.mxu0 0.0
    %1186 = vmatpush.msra.mxu0 0.0
    %1187 = vmatpush.msra.mxu0 0.0
    %1188 = vmatpush.msra.mxu0 0.0
    %1189 = vmatpush.msra.mxu0 0.0
    %1190 = vmatpush.msra.mxu0 %v32
    %1191 = vmatpush.msra.mxu0 %v31
    %1192 = vmatpush.msra.mxu0 %v30
    %1193 = vmatpush.msra.mxu0 %v29
    %1194 = vmatmul.f32.gmra.mxu0 %v1091
    %v1195 = vpop.f32.mrf.mxu0
    %v1196 = vadd.f32 0.0, %v1195
    %1197 = vdwg.mxu0
    %v1199 = vrot.slane %v1196, 1
    %v1201 = vadd.f32 %v73, %v1199
    %v1202 = vxor.u32 %v1201, 2147483648
    %v1203 = vmul.f32 %v1202, 1.442695
    %v1204 = vpow.pop %v1203
    %v1205 = vadd.f32 %v1204, 1.0
    %v1206 = vrcp.pop %v1205
    %v1207 = vmul.f32 %v1205, %v1206
    %v1208 = vsub.f32 1.0, %v1207
    %v1209 = vmul.f32 %v1206, %v1208
    %v1210 = vadd.f32 %v1206, %v1209
    %vm1211 = vweird.f32 %v1205
    %vm1212 = vweird.f32 %v1206
    %vm1213 = vmor %vm1211, %vm1212
    %v1214 = vsel %vm1213, %v1206, %v1210
    %v1215 = vand.u32 2147483647, %v1205
    %vm1216 = vcmp.eq.f32.partialorder %v1215, 8.507059e+37
    %v1217 = vand.u32 %v1205, 2147483648
    %v1218 = vor.u32 1.1754944e-38, %v1217
    %v1219 = vsel %vm1216, %v1218, %v1214
    %v1220 = vmul.f32 1.0, %v1219
    %v1221 = vtanh.pop %v1201
    %v1223 = vrot.slane %v1080, 7
    %v1225 = vmul.f32 %v1220, %v1223
    %1227 = vrot.lane.b32.xlu0 %v1221, 64
    %v1228 = vpop.permute.xlu0 %1227
    %v1230 = vmul.f32 %v1220, %v1228
    %1232 = vrot.lane.b32.xlu0 %v1230, 32
    %v1233 = vpop.permute.xlu0 %1232
    %v1235 = vadd.f32 %v1225, %v1233
    %v1236 = vtanh.pop %v1235
    %1238 = vrot.lane.b32.xlu0 %v1236, 64
    %v1239 = vpop.permute.xlu0 %1238
    %v1241 = vmul.f32 %v1220, %v1239
    %v1243 = vrot.slane %v1241, 7
    %1244 = vrot.lane.b32.xlu0 %v1243, 32
    %v1245 = vpop.permute.xlu0 %1244
    %v1246 = vsel %vm51, %v1245, 0
    %1248 = vmatpush.msra.mxu0 0.0
    %1249 = vmatpush.msra.mxu0 0.0
    %1250 = vmatpush.msra.mxu0 0.0
    %1251 = vmatpush.msra.mxu0 0.0
    %1252 = vmatpush.msra.mxu0 0.0
    %1253 = vmatpush.msra.mxu0 0.0
    %1254 = vmatpush.msra.mxu0 0.0
    %1255 = vmatpush.msra.mxu0 0.0
    %1256 = vmatpush.msra.mxu0 0.0
    %1257 = vmatpush.msra.mxu0 0.0
    %1258 = vmatpush.msra.mxu0 0.0
    %1259 = vmatpush.msra.mxu0 0.0
    %1260 = vmatpush.msra.mxu0 %v36
    %1261 = vmatpush.msra.mxu0 %v35
    %1262 = vmatpush.msra.mxu0 %v34
    %1263 = vmatpush.msra.mxu0 %v33
    %1264 = vmatmul.f32.gmra.mxu0 %v1246
    %v1265 = vpop.f32.mrf.mxu0
    %v1266 = vadd.f32 %v1176, %v1265
    %1267 = vdwg.mxu0
    %v1268 = vxor.u32 %v1266, 2147483648
    %v1269 = vmul.f32 %v1268, 1.442695
    %v1270 = vpow.pop %v1269
    %v1271 = vadd.f32 %v1270, 1.0
    %v1272 = vrcp.pop %v1271
    %v1273 = vmul.f32 %v1271, %v1272
    %v1274 = vsub.f32 1.0, %v1273
    %v1275 = vmul.f32 %v1272, %v1274
    %v1276 = vadd.f32 %v1272, %v1275
    %vm1277 = vweird.f32 %v1271
    %vm1278 = vweird.f32 %v1272
    %vm1279 = vmor %vm1277, %vm1278
    %v1280 = vsel %vm1279, %v1272, %v1276
    %v1281 = vand.u32 2147483647, %v1271
    %vm1282 = vcmp.eq.f32.partialorder %v1281, 8.507059e+37
    %v1283 = vand.u32 %v1271, 2147483648
    %v1284 = vor.u32 1.1754944e-38, %v1283
    %v1285 = vsel %vm1282, %v1284, %v1280
    %v1286 = vmul.f32 1.0, %v1285
    %v1287 = vtanh.pop %v1266
    %v1288 = vmul.f32 %v1286, %v1143
    %1290 = vrot.lane.b32.xlu0 %v1287, 64
    %v1291 = vpop.permute.xlu0 %1290
    %v1293 = vmul.f32 %v1286, %v1291
    %1295 = vrot.lane.b32.xlu0 %v1293, 32
    %v1296 = vpop.permute.xlu0 %1295
    %v1298 = vadd.f32 %v1288, %v1296
    %v1299 = vtanh.pop %v1298
    %1301 = vrot.lane.b32.xlu0 %v1299, 64
    %v1302 = vpop.permute.xlu0 %1301
    %v1304 = vmul.f32 %v1286, %v1302
    %vm1305 = vcmp.eq.s32.totalorder %v76, 7
    %v1306 = vperm.slane %v1304, 0
    %v1307 = vsel %vm1305, %v1306, %v1152
    %v1308 = vperm.slane %v47, 0
    %1310 = vrot.lane.b32.xlu0 %v1307, 32
    %v1311 = vpop.permute.xlu0 %1310
    %v1312 = vsel %vm51, %v1311, 0
    %1314 = vmatpush.msra.mxu0 0.0
    %1315 = vmatpush.msra.mxu0 0.0
    %1316 = vmatpush.msra.mxu0 0.0
    %1317 = vmatpush.msra.mxu0 0.0
    %1318 = vmatpush.msra.mxu0 0.0
    %1319 = vmatpush.msra.mxu0 0.0
    %1320 = vmatpush.msra.mxu0 0.0
    %1321 = vmatpush.msra.mxu0 0.0
    %1322 = vmatpush.msra.mxu0 0.0
    %1323 = vmatpush.msra.mxu0 0.0
    %1324 = vmatpush.msra.mxu0 0.0
    %1325 = vmatpush.msra.mxu0 0.0
    %1326 = vmatpush.msra.mxu0 %v46
    %1327 = vmatpush.msra.mxu0 %v45
    %1328 = vmatpush.msra.mxu0 %v44
    %1329 = vmatpush.msra.mxu0 %v43
    %1330 = vmatmul.f32.gmra.mxu0 %v1312
    %v1331 = vpop.f32.mrf.mxu0
    %v1332 = vadd.f32 %v1308, %v1331
    %1333 = vdwg.mxu0
    %v1334 = vtanh.pop %v1332
    %v1335 = vmul.f32 %v1334, 1.5
    %vm1336 = vcmask 64512
    %v1337 = vsel %vm1336, %v1335, -inf
    %1338 = vmax.xlane.f32.xlu0 %v1337
    %v1339 = vpop.xlane.xlu0 %1338
    %v1340 = vsub.f32 %v1335, %v1339
    %v1341 = vmul.f32 %v1340, 1.442695
    %v1342 = vpow.pop %v1341
    %v1343 = vsel %vm1336, %v1342, 0.0
    %1344 = vadd.xlane.f32.xlu0 %v1343
    %v1345 = vpop.xlane.xlu0 %1344
    %v1346 = vlog2.pop %v1345
    %v1347 = vmul.f32 %v1346, 0.6931472
    %v1348 = vsub.f32 %v1340, %v1347
    %v1349 = vmul.f32 %v1348, 1.442695
    %v1350 = vpow.pop %v1349
    %v1351 = vmul.f32 %v1350, %v1348
    %v1352 = vsel %vm1336, %v1351, 0.0
    %1353 = vadd.xlane.f32.xlu0 %v1352
    %v1354 = vpop.xlane.xlu0 %1353
    %v1355 = vsub.f32 0.0, %v1354
    %v1356 = vadd.f32 %v1335, %v49
    %v1357 = vsel %vm1336, %v1356, -inf
    %1358 = vmax.xlane.f32.xlu0 %v1357
    %v1359 = vpop.xlane.xlu0 %1358
    %v1360 = vlaneseq
    %v1361 = vand.u32 %v1360, 127
    %vm1362 = vcmp.eq.f32.partialorder %v1356, %v1359
    %v1363 = vsel %vm1362, %v1361, 8
    %v1364 = vsel %vm1336, %v1363, 2147483647
    %v1365 = vand.u32 %v1364, 65535
    %v1366 = vshra.s32 %v1364, 16
    %v1367 = vcvt.s32.f32 %v1365
    %v1368 = vcvt.s32.f32 %v1366
    %1369 = vmin.xlane.f32.xlu0 %v1368
    %v1370 = vpop.xlane.xlu0 %1369
    %vm1371 = vcmp.eq.f32.partialorder %v1368, %v1370
    %v1372 = vsel %vm1371, %v1367, inf
    %1373 = vmin.xlane.f32.xlu0 %v1372
    %v1374 = vpop.xlane.xlu0 %1373
    %v1375 = vcvt.f32.s32 %v1374
    %v1376 = vcvt.f32.s32 %v1370
    %v1377 = vshll.u32 %v1376, 16
    %v1378 = vadd.s32 %v1377, %v1375
    %vm1379 = vcmp.eq.s32.totalorder %v1361, %v1378
    %v1380 = vsel %vm1379, %v1348, 0.0
    %v1381 = vsel %vm1336, %v1380, 0.0
    %1382 = vadd.xlane.f32.xlu0 %v1381
    %v1383 = vpop.xlane.xlu0 %1382
    %vm1384 = vcmp.eq.s32.totalorder %v1361, 0
    %v1385 = vcvt.s32.f32 %v1378
    %vm1386 = vcmp.eq.s32.totalorder %v1361, 1
    %vm1387 = vcmp.eq.s32.totalorder %v1361, 2
    %v1388 = vsel %vm1387, %v1355, 0.0
    %v1389 = vsel %vm1386, %v1383, %v1388
    %v1390 = vsel %vm1384, %v1385, %v1389
    %1391 = vst [vmem:[#allocation5] sm:$0xff] %v1390
    // Predicated region
    $region10: #{tpu_custom_call.1} parent=1 // pred_check
      _
    $region11: #{tpu_custom_call.1} parent=1 // pred_check_branch
      %1393 = sbr.rel (0) target = $region13
    $region12: #{tpu_custom_call.1} parent=1 // pred_region
      %1395 = vsyncadd [#allocation4], 0
      %s1397 = sshll.u32 [#allocation5], 4
      %s1398 = int_to_ptr.vmem [resolvable:$true] %s1397
      %s1399 = sshll.u32 %s1, 4
      %s1400 = int_to_ptr.hbm [resolvable:$true] %s1399
      %1402 = dma.vmem_to_hbm [thread:$0]  %s1398, 128, %s1400, [#allocation4]
    $region13: #{tpu_custom_call.1} parent=1 // pred_fallthru
      _
    // Predicated region
    $region14: #{tpu_custom_call.1} parent=1 // pred_check
      _
    $region15: #{tpu_custom_call.1} parent=1 // pred_check_branch
      %1404 = sbr.rel (0) target = $region17
    $region16: #{tpu_custom_call.1} parent=1 // pred_region
      %1406 = dma.done [#allocation4], 128
    $region17: #{tpu_custom_call.1} parent=1 // pred_fallthru
      _
    %1407 = vsyncpa [#allocation3], 1
    %1408 = vsyncpa [#allocation4], 1

</llo_original>
